<compile_context>
chip_gen: v7x
topology: tpu7x:2x2x1
jax: 0.10.0
libtpu: 0.0.40
codegen_flags: <defaults>
</compile_context>

<pallas_src>
import jax
import jax.numpy as jnp
from jax.experimental import pallas as pl
from jax.experimental.pallas import tpu as pltpu

EPS = 1e-5               # torch.nn.BatchNorm2d default eps
TILE_M = 512             # pixel tile on the lane axis (multiple of 128)
MIN_VMEM = 32 * 1024 * 1024


def _round_up(x, m):
    return ((x + m - 1) // m) * m


def _tile_and_pad(m):
    tile = min(TILE_M, _round_up(m, 128))
    return tile, _round_up(m, tile)


def _compiler_params(block_bytes):
    # explicit scoped-VMEM budget: double-buffered blocks + headroom (portable
    # across 128 MiB v5e/v6e and 64 MiB v7x parts).
    limit = int(min(max(4 * block_bytes, MIN_VMEM), 112 * 1024 * 1024))
    return pltpu.CompilerParams(dimension_semantics=("parallel",),
                                vmem_limit_bytes=limit)


# ----------------------------- Pallas kernels -----------------------------

def _matmul_bias_kernel(x_ref, w_ref, b_ref, o_ref):
    # 1x1 conv: (Cout, Cin) @ (Cin, TILE_M) + bias, lane-dense output.
    o_ref[...] = (jnp.dot(w_ref[...], x_ref[...],
                          preferred_element_type=jnp.float32) + b_ref[...])


def _conv_relu_stats_kernel(p_ref, w_ref, b_ref, y_ref, s_ref, ss_ref):
    # pass 1: conv (bf16 MXU, f32 acc) + bias + ReLU, plus per-tile BN partials.
    y = jnp.dot(w_ref[...], p_ref[...],
                preferred_element_type=jnp.float32) + b_ref[...]
    y = jnp.maximum(y, 0.0)                                  # ReLU (f32 epilogue)
    y_ref[...] = y
    s_ref[0, :, :] = jnp.sum(y, axis=1, keepdims=True)       # per-channel sum
    ss_ref[0, :, :] = jnp.sum(y * y, axis=1, keepdims=True)  # per-channel sum of squares


def _scale_shift_kernel(y_ref, sc_ref, sh_ref, o_ref):
    # pass 2: y * scale + shift  (BatchNorm affine with finalized batch stats)
    o_ref[...] = (y_ref[...] * sc_ref[...] + sh_ref[...]).astype(o_ref.dtype)


# ------------------------------ kernel wrappers ------------------------------

def _pointwise_conv_cm(x_cm, w2d, bias):
    """x_cm (Cin, M) bf16, w2d (Cout, Cin) bf16, bias (Cout,) f32 -> (Cout, M) f32."""
    Cin, M = x_cm.shape
    Cout = w2d.shape[0]
    tile, m_pad = _tile_and_pad(M)
    x_p = jnp.pad(x_cm, ((0, 0), (0, m_pad - M)))
    n_t = pl.cdiv(m_pad, tile)
    blk_bytes = Cin * tile * 2 + Cout * Cin * 2 + Cout * 4 + Cout * tile * 4
    out = pl.pallas_call(
        _matmul_bias_kernel,
        out_shape=jax.ShapeDtypeStruct((Cout, m_pad), jnp.float32),
        grid=(n_t,),
        in_specs=[pl.BlockSpec((Cin, tile), lambda i: (0, i)),
                  pl.BlockSpec((Cout, Cin), lambda i: (0, 0)),
                  pl.BlockSpec((Cout, 1), lambda i: (0, 0))],
        out_specs=pl.BlockSpec((Cout, tile), lambda i: (0, i)),
        compiler_params=_compiler_params(blk_bytes),
    )(x_p, w2d, bias.reshape(Cout, 1).astype(jnp.float32))
    return out[:, :M]


def _conv_relu_bn_stage(x_c, w, b, gamma, beta):
    """x_c (Ci, N, H, W) f32 -> (Co, N, H, W) f32: Conv7x7(pad 3) -> ReLU -> BatchNorm2d."""
    Ci, N, H, W = x_c.shape
    Co, _, K, _ = w.shape
    pad = K // 2
    M = N * H * W
    Kc = K * K * Ci

    # im2col emitted directly in bf16, (Kc, M) layout: taps major, channels minor,
    # pixels on the lane axis.
    xb = x_c.astype(jnp.bfloat16)
    xp = jnp.pad(xb, ((0, 0), (0, 0), (pad, pad), (pad, pad)))
    cols = [xp[:, :, kh:kh + H, kw:kw + W] for kh in range(K) for kw in range(K)]
    patches = jnp.stack(cols, axis=0).reshape(Kc, M)

    w2d = jnp.transpose(w, (0, 2, 3, 1)).reshape(Co, Kc).astype(jnp.bfloat16)
    b2 = b.reshape(Co, 1).astype(jnp.float32)

    tile, m_pad = _tile_and_pad(M)
    n_pad = m_pad - M
    patches = jnp.pad(patches, ((0, 0), (0, n_pad)))
    n_t = pl.cdiv(m_pad, tile)

    blk_bytes = (Kc * tile * 2 + Co * Kc * 2 + Co * 4
                 + Co * tile * 4 + 2 * Co * 4)
    y, psum, psumsq = pl.pallas_call(
        _conv_relu_stats_kernel,
        out_shape=(jax.ShapeDtypeStruct((Co, m_pad), jnp.float32),
                   jax.ShapeDtypeStruct((n_t, Co, 1), jnp.float32),
                   jax.ShapeDtypeStruct((n_t, Co, 1), jnp.float32)),
        grid=(n_t,),
        in_specs=[pl.BlockSpec((Kc, tile), lambda i: (0, i)),
                  pl.BlockSpec((Co, Kc), lambda i: (0, 0)),
                  pl.BlockSpec((Co, 1), lambda i: (0, 0))],
        out_specs=(pl.BlockSpec((Co, tile), lambda i: (0, i)),
                   pl.BlockSpec((1, Co, 1), lambda i: (i, 0, 0)),
                   pl.BlockSpec((1, Co, 1), lambda i: (i, 0, 0))),
        compiler_params=_compiler_params(blk_bytes),
    )(patches, w2d, b2)

    # finalize batch statistics in glue (tiny per-channel vectors).
    # padded columns contribute exactly ReLU(bias) per channel -> subtract exactly.
    relu_b = jnp.maximum(b.astype(jnp.float32), 0.0)
    tot_s = jnp.sum(psum[:, :, 0], axis=0) - n_pad * relu_b
    tot_ss = jnp.sum(psumsq[:, :, 0], axis=0) - n_pad * relu_b * relu_b
    mean = tot_s / M
    var = jnp.maximum(tot_ss / M - mean * mean, 0.0)          # biased (training-mode)
    scale = gamma * jax.lax.rsqrt(var + EPS)
    shift = beta - mean * scale

    blk_bytes2 = 2 * Co * tile * 4 + 2 * Co * 4
    out = pl.pallas_call(
        _scale_shift_kernel,
        out_shape=jax.ShapeDtypeStruct((Co, m_pad), jnp.float32),
        grid=(n_t,),
        in_specs=[pl.BlockSpec((Co, tile), lambda i: (0, i)),
                  pl.BlockSpec((Co, 1), lambda i: (0, 0)),
                  pl.BlockSpec((Co, 1), lambda i: (0, 0))],
        out_specs=pl.BlockSpec((Co, tile), lambda i: (0, i)),
        compiler_params=_compiler_params(blk_bytes2),
    )(y, scale.reshape(Co, 1), shift.reshape(Co, 1))

    return out[:, :M].reshape(Co, N, H, W)


# ------------------------------- forward pass -------------------------------

def unet_upconv_block(x_nchw, params):
    """Forward pass of UNetUpConvBlock.  x: (N, Cin, H, W) NCHW float32."""
    N, Cin, H, W = x_nchw.shape
    C4 = 4 * Cin

    # channels-on-sublane / pixels-on-lane layout
    x_cm = jnp.transpose(x_nchw, (1, 0, 2, 3)).reshape(Cin, N * H * W)

    # --- upconv: Conv2d(Cin, 4*Cin, kernel_size=1) ---
    w_up, b_up = params["upconv"]                       # (4Cin, Cin, 1, 1), (4Cin,)
    w2d_up = w_up[:, :, 0, 0].astype(jnp.bfloat16)      # (4Cin, Cin)
    up = _pointwise_conv_cm(x_cm.astype(jnp.bfloat16), w2d_up, b_up)
    up = up.reshape(C4, N, H, W)

    # --- PixelShuffle(2): out[c, n, 2h+i, 2w+j] = up[4c+2i+j, n, h, w] ---
    t = up.reshape(Cin, 2, 2, N, H, W)
    t = jnp.transpose(t, (0, 3, 4, 1, 5, 2))            # (c, n, h, i, w, j)
    y = t.reshape(Cin, N, 2 * H, 2 * W)

    # --- UNetConvBlock (pooling=False): two [Conv7x7 -> ReLU -> BN] stages ---
    o = _conv_relu_bn_stage(y, *params["conv1"])
    o = _conv_relu_bn_stage(o, *params["conv2"])

    return jnp.transpose(o, (1, 0, 2, 3))               # back to NCHW


# --------------------------- pure-JAX reference ---------------------------
# Mirrors the kernels' matmul operand precision (bf16 inputs, f32 accumulation,
# f32 ReLU/BN epilogue), which is the standard TPU mixed-precision convention.

def _ref_conv2d(x, w, b, padding):
    out = jax.lax.conv_general_dilated(
        x.astype(jnp.bfloat16), w.astype(jnp.bfloat16),
        window_strides=(1, 1),
        padding=[(padding, padding), (padding, padding)],
        dimension_numbers=("NCHW", "OIHW", "NCHW"),
        preferred_element_type=jnp.float32)
    return out + b[None, :, None, None]


def _ref_bn(x, g, bt):
    m = jnp.mean(x, axis=(0, 2, 3), keepdims=True)
    v = jnp.mean((x - m) ** 2, axis=(0, 2, 3), keepdims=True)
    return (x - m) * jax.lax.rsqrt(v + EPS) * g[None, :, None, None] + bt[None, :, None, None]


def _ref_pixelshuffle(x, r=2):
    N, C, H, W = x.shape
    c = C // (r * r)
    x = x.reshape(N, c, r, r, H, W)
    x = jnp.transpose(x, (0, 1, 4, 2, 5, 3))
    return x.reshape(N, c, H * r, W * r)


def reference_forward(x, params):
    w_up, b_up = params["upconv"]
    out = _ref_conv2d(x, w_up, b_up, 0)
    out = _ref_pixelshuffle(out, 2)
    w1, b1, g1, bt1 = params["conv1"]
    out = _ref_bn(jnp.maximum(_ref_conv2d(out, w1, b1, 3), 0.0), g1, bt1)
    w2, b2, g2, bt2 = params["conv2"]
    out = _ref_bn(jnp.maximum(_ref_conv2d(out, w2, b2, 3), 0.0), g2, bt2)
    return out


# --------------------------------- main ---------------------------------

if __name__ == "__main__":
    N, Cin, Cout, H, W = 2, 4, 8, 16, 16
    key = jax.random.PRNGKey(0)
    ks = jax.random.split(key, 12)

    x = jax.random.normal(ks[0], (N, Cin, H, W), jnp.float32)

    params = {
        "upconv": (
            0.10 * jax.random.normal(ks[1], (4 * Cin, Cin, 1, 1), jnp.float32),
            0.10 * jax.random.normal(ks[2], (4 * Cin,), jnp.float32),
        ),
        "conv1": (
            0.05 * jax.random.normal(ks[3], (Cout, Cin, 7, 7), jnp.float32),
            0.10 * jax.random.normal(ks[4], (Cout,), jnp.float32),
            1.0 + 0.10 * jax.random.normal(ks[5], (Cout,), jnp.float32),   # BN gamma
            0.10 * jax.random.normal(ks[6], (Cout,), jnp.float32),         # BN beta
        ),
        "conv2": (
            0.05 * jax.random.normal(ks[7], (Cout, Cout, 7, 7), jnp.float32),
            0.10 * jax.random.normal(ks[8], (Cout,), jnp.float32),
            1.0 + 0.10 * jax.random.normal(ks[9], (Cout,), jnp.float32),
            0.10 * jax.random.normal(ks[10], (Cout,), jnp.float32),
        ),
    }

    fwd = jax.jit(unet_upconv_block)
    out = jax.block_until_ready(fwd(x, params))
    ref = jax.block_until_ready(reference_forward(x, params))

    assert out.shape == (N, Cout, 2 * H, 2 * W), out.shape
    assert jnp.allclose(out, ref, atol=1e-2, rtol=1e-2), (
        float(jnp.max(jnp.abs(out - ref))))

    print("KERNEL_OK")
</pallas_src>

<mosaic_0001>
module attributes {stable_mosaic.version = 11 : i64} {
  func.func @_matmul_bias_kernel(%arg0: i32, %arg1: memref<4x512xbf16, #tpu.memory_space<vmem>>, %arg2: memref<16x4xbf16, #tpu.memory_space<vmem>>, %arg3: memref<16x1xf32, #tpu.memory_space<vmem>>, %arg4: memref<16x512xf32, #tpu.memory_space<vmem>>) attributes {dimension_semantics = [#tpu.dimension_semantics<parallel>], iteration_bounds = array<i64: 1>, scalar_prefetch = 0 : i64, scratch_operands = 0 : i64, tpu.core_type = #tpu.core_type<tc>, window_params = [{transform_indices = @transform_0, window_bounds = array<i64: 4, 512>}, {pipeline_mode = #tpu.pipeline_mode<synchronous>, transform_indices = @transform_1, window_bounds = array<i64: 16, 4>}, {pipeline_mode = #tpu.pipeline_mode<synchronous>, transform_indices = @transform_2, window_bounds = array<i64: 16, 1>}, {transform_indices = @transform_3, window_bounds = array<i64: 16, 512>}]} {
    %c0 = arith.constant 0 : index
    %c0_0 = arith.constant 0 : index
    %0 = vector.load %arg2[%c0, %c0_0] : memref<16x4xbf16, #tpu.memory_space<vmem>>, vector<16x4xbf16>
    %c0_1 = arith.constant 0 : index
    %c0_2 = arith.constant 0 : index
    %1 = vector.load %arg1[%c0_1, %c0_2] : memref<4x512xbf16, #tpu.memory_space<vmem>>, vector<4x512xbf16>
    %cst = arith.constant dense<0.000000e+00> : vector<16x512xf32>
    %2 = tpu.matmul %0, %1, %cst {dimension_numbers = #tpu.dot_dimension_numbers<[1], [0], [0], [1], [0, 0, 1, 1], [], []>} : vector<16x4xbf16>, vector<4x512xbf16>, vector<16x512xf32> -> vector<16x512xf32>
    %c0_3 = arith.constant 0 : index
    %c0_4 = arith.constant 0 : index
    %3 = vector.load %arg3[%c0_3, %c0_4] : memref<16x1xf32, #tpu.memory_space<vmem>>, vector<16x1xf32>
    %4 = vector.broadcast %3 : vector<16x1xf32> to vector<16x512xf32>
    %5 = arith.addf %2, %4 : vector<16x512xf32>
    %c0_5 = arith.constant 0 : index
    %c0_6 = arith.constant 0 : index
    %6 = vector.load %arg4[%c0_5, %c0_6] : memref<16x512xf32, #tpu.memory_space<vmem>>, vector<16x512xf32>
    tpu.vector_store %arg4[%c0_5, %c0_6], %5 {strides = array<i32>} : memref<16x512xf32, #tpu.memory_space<vmem>>, vector<16x512xf32>,
    return
  }
  func.func @transform_0(%arg0: i32) -> (i32, i32) {
    %c0_i32 = arith.constant 0 : i32
    %c0_i32_0 = arith.constant 0 : i32
    return %c0_i32, %arg0 : i32, i32
  }
  func.func @transform_1(%arg0: i32) -> (i32, i32) {
    %c0_i32 = arith.constant 0 : i32
    %c0_i32_0 = arith.constant 0 : i32
    %c0_i32_1 = arith.constant 0 : i32
    return %c0_i32, %c0_i32_0 : i32, i32
  }
  func.func @transform_2(%arg0: i32) -> (i32, i32) {
    %c0_i32 = arith.constant 0 : i32
    %c0_i32_0 = arith.constant 0 : i32
    %c0_i32_1 = arith.constant 0 : i32
    return %c0_i32, %c0_i32_0 : i32, i32
  }
  func.func @transform_3(%arg0: i32) -> (i32, i32) {
    %c0_i32 = arith.constant 0 : i32
    %c0_i32_0 = arith.constant 0 : i32
    return %c0_i32, %arg0 : i32, i32
  }
}

module attributes {stable_mosaic.version = 11 : i64} {
  func.func @_conv_relu_stats_kernel(%arg0: i32, %arg1: memref<196x512xbf16, #tpu.memory_space<vmem>>, %arg2: memref<8x196xbf16, #tpu.memory_space<vmem>>, %arg3: memref<8x1xf32, #tpu.memory_space<vmem>>, %arg4: memref<8x512xf32, #tpu.memory_space<vmem>>, %arg5: memref<1x8x1xf32, #tpu.memory_space<vmem>>, %arg6: memref<1x8x1xf32, #tpu.memory_space<vmem>>) attributes {dimension_semantics = [#tpu.dimension_semantics<parallel>], iteration_bounds = array<i64: 4>, scalar_prefetch = 0 : i64, scratch_operands = 0 : i64, tpu.core_type = #tpu.core_type<tc>, window_params = [{transform_indices = @transform_0, window_bounds = array<i64: 196, 512>}, {pipeline_mode = #tpu.pipeline_mode<synchronous>, transform_indices = @transform_1, window_bounds = array<i64: 8, 196>}, {pipeline_mode = #tpu.pipeline_mode<synchronous>, transform_indices = @transform_2, window_bounds = array<i64: 8, 1>}, {transform_indices = @transform_3, window_bounds = array<i64: 8, 512>}, {transform_indices = @transform_4, window_bounds = array<i64: 1, 8, 1>}, {transform_indices = @transform_5, window_bounds = array<i64: 1, 8, 1>}]} {
    %c0 = arith.constant 0 : index
    %c0_0 = arith.constant 0 : index
    %0 = vector.load %arg2[%c0, %c0_0] : memref<8x196xbf16, #tpu.memory_space<vmem>>, vector<8x196xbf16>
    %c0_1 = arith.constant 0 : index
    %c0_2 = arith.constant 0 : index
    %1 = vector.load %arg1[%c0_1, %c0_2] : memref<196x512xbf16, #tpu.memory_space<vmem>>, vector<196x512xbf16>
    %cst = arith.constant dense<0.000000e+00> : vector<8x512xf32>
    %2 = tpu.matmul %0, %1, %cst {dimension_numbers = #tpu.dot_dimension_numbers<[1], [0], [0], [1], [0, 0, 1, 1], [], []>} : vector<8x196xbf16>, vector<196x512xbf16>, vector<8x512xf32> -> vector<8x512xf32>
    %c0_3 = arith.constant 0 : index
    %c0_4 = arith.constant 0 : index
    %3 = vector.load %arg3[%c0_3, %c0_4] : memref<8x1xf32, #tpu.memory_space<vmem>>, vector<8x1xf32>
    %4 = vector.broadcast %3 : vector<8x1xf32> to vector<8x512xf32>
    %5 = arith.addf %2, %4 : vector<8x512xf32>
    %cst_5 = arith.constant 0.000000e+00 : f32
    %6 = vector.broadcast %cst_5 : f32 to vector<8x512xf32>
    %7 = arith.maximumf %5, %6 : vector<8x512xf32>
    %c0_6 = arith.constant 0 : index
    %c0_7 = arith.constant 0 : index
    %8 = vector.load %arg4[%c0_6, %c0_7] : memref<8x512xf32, #tpu.memory_space<vmem>>, vector<8x512xf32>
    tpu.vector_store %arg4[%c0_6, %c0_7], %7 {strides = array<i32>} : memref<8x512xf32, #tpu.memory_space<vmem>>, vector<8x512xf32>,
    %cst_8 = arith.constant dense<0.000000e+00> : vector<8xf32>
    %9 = vector.multi_reduction <add>, %7, %cst_8 [1] : vector<8x512xf32> to vector<8xf32>
    %10 = vector.shape_cast %9 : vector<8xf32> to vector<8x1xf32>
    %c0_9 = arith.constant 0 : index
    %c0_10 = arith.constant 0 : index
    %c0_11 = arith.constant 0 : index
    %11 = vector.load %arg5[%c0_9, %c0_10, %c0_11] : memref<1x8x1xf32, #tpu.memory_space<vmem>>, vector<1x8x1xf32>
    %12 = vector.shape_cast %11 : vector<1x8x1xf32> to vector<8x1xf32>
    %13 = vector.shape_cast %10 : vector<8x1xf32> to vector<1x8x1xf32>
    tpu.vector_store %arg5[%c0_9, %c0_10, %c0_11], %13 {strides = array<i32>} : memref<1x8x1xf32, #tpu.memory_space<vmem>>, vector<1x8x1xf32>,
    %14 = arith.mulf %7, %7 : vector<8x512xf32>
    %cst_12 = arith.constant dense<0.000000e+00> : vector<8xf32>
    %15 = vector.multi_reduction <add>, %14, %cst_12 [1] : vector<8x512xf32> to vector<8xf32>
    %16 = vector.shape_cast %15 : vector<8xf32> to vector<8x1xf32>
    %c0_13 = arith.constant 0 : index
    %c0_14 = arith.constant 0 : index
    %c0_15 = arith.constant 0 : index
    %17 = vector.load %arg6[%c0_13, %c0_14, %c0_15] : memref<1x8x1xf32, #tpu.memory_space<vmem>>, vector<1x8x1xf32>
    %18 = vector.shape_cast %17 : vector<1x8x1xf32> to vector<8x1xf32>
    %19 = vector.shape_cast %16 : vector<8x1xf32> to vector<1x8x1xf32>
    tpu.vector_store %arg6[%c0_13, %c0_14, %c0_15], %19 {strides = array<i32>} : memref<1x8x1xf32, #tpu.memory_space<vmem>>, vector<1x8x1xf32>,
    return
  }
  func.func @transform_0(%arg0: i32) -> (i32, i32) {
    %c0_i32 = arith.constant 0 : i32
    %c0_i32_0 = arith.constant 0 : i32
    return %c0_i32, %arg0 : i32, i32
  }
  func.func @transform_1(%arg0: i32) -> (i32, i32) {
    %c0_i32 = arith.constant 0 : i32
    %c0_i32_0 = arith.constant 0 : i32
    %c0_i32_1 = arith.constant 0 : i32
    return %c0_i32, %c0_i32_0 : i32, i32
  }
  func.func @transform_2(%arg0: i32) -> (i32, i32) {
    %c0_i32 = arith.constant 0 : i32
    %c0_i32_0 = arith.constant 0 : i32
    %c0_i32_1 = arith.constant 0 : i32
    return %c0_i32, %c0_i32_0 : i32, i32
  }
  func.func @transform_3(%arg0: i32) -> (i32, i32) {
    %c0_i32 = arith.constant 0 : i32
    %c0_i32_0 = arith.constant 0 : i32
    return %c0_i32, %arg0 : i32, i32
  }
  func.func @transform_4(%arg0: i32) -> (i32, i32, i32) {
    %c0_i32 = arith.constant 0 : i32
    %c0_i32_0 = arith.constant 0 : i32
    %c0_i32_1 = arith.constant 0 : i32
    return %arg0, %c0_i32, %c0_i32_0 : i32, i32, i32
  }
  func.func @transform_5(%arg0: i32) -> (i32, i32, i32) {
    %c0_i32 = arith.constant 0 : i32
    %c0_i32_0 = arith.constant 0 : i32
    %c0_i32_1 = arith.constant 0 : i32
    return %arg0, %c0_i32, %c0_i32_0 : i32, i32, i32
  }
}

module attributes {stable_mosaic.version = 11 : i64} {
  func.func @_scale_shift_kernel(%arg0: i32, %arg1: memref<8x512xf32, #tpu.memory_space<vmem>>, %arg2: memref<8x1xf32, #tpu.memory_space<vmem>>, %arg3: memref<8x1xf32, #tpu.memory_space<vmem>>, %arg4: memref<8x512xf32, #tpu.memory_space<vmem>>) attributes {dimension_semantics = [#tpu.dimension_semantics<parallel>], iteration_bounds = array<i64: 4>, scalar_prefetch = 0 : i64, scratch_operands = 0 : i64, tpu.core_type = #tpu.core_type<tc>, window_params = [{transform_indices = @transform_0, window_bounds = array<i64: 8, 512>}, {pipeline_mode = #tpu.pipeline_mode<synchronous>, transform_indices = @transform_1, window_bounds = array<i64: 8, 1>}, {pipeline_mode = #tpu.pipeline_mode<synchronous>, transform_indices = @transform_2, window_bounds = array<i64: 8, 1>}, {transform_indices = @transform_3, window_bounds = array<i64: 8, 512>}]} {
    %c0 = arith.constant 0 : index
    %c0_0 = arith.constant 0 : index
    %0 = vector.load %arg1[%c0, %c0_0] : memref<8x512xf32, #tpu.memory_space<vmem>>, vector<8x512xf32>
    %c0_1 = arith.constant 0 : index
    %c0_2 = arith.constant 0 : index
    %1 = vector.load %arg2[%c0_1, %c0_2] : memref<8x1xf32, #tpu.memory_space<vmem>>, vector<8x1xf32>
    %2 = vector.broadcast %1 : vector<8x1xf32> to vector<8x512xf32>
    %3 = arith.mulf %0, %2 : vector<8x512xf32>
    %c0_3 = arith.constant 0 : index
    %c0_4 = arith.constant 0 : index
    %4 = vector.load %arg3[%c0_3, %c0_4] : memref<8x1xf32, #tpu.memory_space<vmem>>, vector<8x1xf32>
    %5 = vector.broadcast %4 : vector<8x1xf32> to vector<8x512xf32>
    %6 = arith.addf %3, %5 : vector<8x512xf32>
    %c0_5 = arith.constant 0 : index
    %c0_6 = arith.constant 0 : index
    %7 = vector.load %arg4[%c0_5, %c0_6] : memref<8x512xf32, #tpu.memory_space<vmem>>, vector<8x512xf32>
    tpu.vector_store %arg4[%c0_5, %c0_6], %6 {strides = array<i32>} : memref<8x512xf32, #tpu.memory_space<vmem>>, vector<8x512xf32>,
    return
  }
  func.func @transform_0(%arg0: i32) -> (i32, i32) {
    %c0_i32 = arith.constant 0 : i32
    %c0_i32_0 = arith.constant 0 : i32
    return %c0_i32, %arg0 : i32, i32
  }
  func.func @transform_1(%arg0: i32) -> (i32, i32) {
    %c0_i32 = arith.constant 0 : i32
    %c0_i32_0 = arith.constant 0 : i32
    %c0_i32_1 = arith.constant 0 : i32
    return %c0_i32, %c0_i32_0 : i32, i32
  }
  func.func @transform_2(%arg0: i32) -> (i32, i32) {
    %c0_i32 = arith.constant 0 : i32
    %c0_i32_0 = arith.constant 0 : i32
    %c0_i32_1 = arith.constant 0 : i32
    return %c0_i32, %c0_i32_0 : i32, i32
  }
  func.func @transform_3(%arg0: i32) -> (i32, i32) {
    %c0_i32 = arith.constant 0 : i32
    %c0_i32_0 = arith.constant 0 : i32
    return %c0_i32, %arg0 : i32, i32
  }
}

module attributes {stable_mosaic.version = 11 : i64} {
  func.func @_conv_relu_stats_kernel(%arg0: i32, %arg1: memref<392x512xbf16, #tpu.memory_space<vmem>>, %arg2: memref<8x392xbf16, #tpu.memory_space<vmem>>, %arg3: memref<8x1xf32, #tpu.memory_space<vmem>>, %arg4: memref<8x512xf32, #tpu.memory_space<vmem>>, %arg5: memref<1x8x1xf32, #tpu.memory_space<vmem>>, %arg6: memref<1x8x1xf32, #tpu.memory_space<vmem>>) attributes {dimension_semantics = [#tpu.dimension_semantics<parallel>], iteration_bounds = array<i64: 4>, scalar_prefetch = 0 : i64, scratch_operands = 0 : i64, tpu.core_type = #tpu.core_type<tc>, window_params = [{transform_indices = @transform_0, window_bounds = array<i64: 392, 512>}, {pipeline_mode = #tpu.pipeline_mode<synchronous>, transform_indices = @transform_1, window_bounds = array<i64: 8, 392>}, {pipeline_mode = #tpu.pipeline_mode<synchronous>, transform_indices = @transform_2, window_bounds = array<i64: 8, 1>}, {transform_indices = @transform_3, window_bounds = array<i64: 8, 512>}, {transform_indices = @transform_4, window_bounds = array<i64: 1, 8, 1>}, {transform_indices = @transform_5, window_bounds = array<i64: 1, 8, 1>}]} {
    %c0 = arith.constant 0 : index
    %c0_0 = arith.constant 0 : index
    %0 = vector.load %arg2[%c0, %c0_0] : memref<8x392xbf16, #tpu.memory_space<vmem>>, vector<8x392xbf16>
    %c0_1 = arith.constant 0 : index
    %c0_2 = arith.constant 0 : index
    %1 = vector.load %arg1[%c0_1, %c0_2] : memref<392x512xbf16, #tpu.memory_space<vmem>>, vector<392x512xbf16>
    %cst = arith.constant dense<0.000000e+00> : vector<8x512xf32>
    %2 = tpu.matmul %0, %1, %cst {dimension_numbers = #tpu.dot_dimension_numbers<[1], [0], [0], [1], [0, 0, 1, 1], [], []>} : vector<8x392xbf16>, vector<392x512xbf16>, vector<8x512xf32> -> vector<8x512xf32>
    %c0_3 = arith.constant 0 : index
    %c0_4 = arith.constant 0 : index
    %3 = vector.load %arg3[%c0_3, %c0_4] : memref<8x1xf32, #tpu.memory_space<vmem>>, vector<8x1xf32>
    %4 = vector.broadcast %3 : vector<8x1xf32> to vector<8x512xf32>
    %5 = arith.addf %2, %4 : vector<8x512xf32>
    %cst_5 = arith.constant 0.000000e+00 : f32
    %6 = vector.broadcast %cst_5 : f32 to vector<8x512xf32>
    %7 = arith.maximumf %5, %6 : vector<8x512xf32>
    %c0_6 = arith.constant 0 : index
    %c0_7 = arith.constant 0 : index
    %8 = vector.load %arg4[%c0_6, %c0_7] : memref<8x512xf32, #tpu.memory_space<vmem>>, vector<8x512xf32>
    tpu.vector_store %arg4[%c0_6, %c0_7], %7 {strides = array<i32>} : memref<8x512xf32, #tpu.memory_space<vmem>>, vector<8x512xf32>,
    %cst_8 = arith.constant dense<0.000000e+00> : vector<8xf32>
    %9 = vector.multi_reduction <add>, %7, %cst_8 [1] : vector<8x512xf32> to vector<8xf32>
    %10 = vector.shape_cast %9 : vector<8xf32> to vector<8x1xf32>
    %c0_9 = arith.constant 0 : index
    %c0_10 = arith.constant 0 : index
    %c0_11 = arith.constant 0 : index
    %11 = vector.load %arg5[%c0_9, %c0_10, %c0_11] : memref<1x8x1xf32, #tpu.memory_space<vmem>>, vector<1x8x1xf32>
    %12 = vector.shape_cast %11 : vector<1x8x1xf32> to vector<8x1xf32>
    %13 = vector.shape_cast %10 : vector<8x1xf32> to vector<1x8x1xf32>
    tpu.vector_store %arg5[%c0_9, %c0_10, %c0_11], %13 {strides = array<i32>} : memref<1x8x1xf32, #tpu.memory_space<vmem>>, vector<1x8x1xf32>,
    %14 = arith.mulf %7, %7 : vector<8x512xf32>
    %cst_12 = arith.constant dense<0.000000e+00> : vector<8xf32>
    %15 = vector.multi_reduction <add>, %14, %cst_12 [1] : vector<8x512xf32> to vector<8xf32>
    %16 = vector.shape_cast %15 : vector<8xf32> to vector<8x1xf32>
    %c0_13 = arith.constant 0 : index
    %c0_14 = arith.constant 0 : index
    %c0_15 = arith.constant 0 : index
    %17 = vector.load %arg6[%c0_13, %c0_14, %c0_15] : memref<1x8x1xf32, #tpu.memory_space<vmem>>, vector<1x8x1xf32>
    %18 = vector.shape_cast %17 : vector<1x8x1xf32> to vector<8x1xf32>
    %19 = vector.shape_cast %16 : vector<8x1xf32> to vector<1x8x1xf32>
    tpu.vector_store %arg6[%c0_13, %c0_14, %c0_15], %19 {strides = array<i32>} : memref<1x8x1xf32, #tpu.memory_space<vmem>>, vector<1x8x1xf32>,
    return
  }
  func.func @transform_0(%arg0: i32) -> (i32, i32) {
    %c0_i32 = arith.constant 0 : i32
    %c0_i32_0 = arith.constant 0 : i32
    return %c0_i32, %arg0 : i32, i32
  }
  func.func @transform_1(%arg0: i32) -> (i32, i32) {
    %c0_i32 = arith.constant 0 : i32
    %c0_i32_0 = arith.constant 0 : i32
    %c0_i32_1 = arith.constant 0 : i32
    return %c0_i32, %c0_i32_0 : i32, i32
  }
  func.func @transform_2(%arg0: i32) -> (i32, i32) {
    %c0_i32 = arith.constant 0 : i32
    %c0_i32_0 = arith.constant 0 : i32
    %c0_i32_1 = arith.constant 0 : i32
    return %c0_i32, %c0_i32_0 : i32, i32
  }
  func.func @transform_3(%arg0: i32) -> (i32, i32) {
    %c0_i32 = arith.constant 0 : i32
    %c0_i32_0 = arith.constant 0 : i32
    return %c0_i32, %arg0 : i32, i32
  }
  func.func @transform_4(%arg0: i32) -> (i32, i32, i32) {
    %c0_i32 = arith.constant 0 : i32
    %c0_i32_0 = arith.constant 0 : i32
    %c0_i32_1 = arith.constant 0 : i32
    return %arg0, %c0_i32, %c0_i32_0 : i32, i32, i32
  }
  func.func @transform_5(%arg0: i32) -> (i32, i32, i32) {
    %c0_i32 = arith.constant 0 : i32
    %c0_i32_0 = arith.constant 0 : i32
    %c0_i32_1 = arith.constant 0 : i32
    return %arg0, %c0_i32, %c0_i32_0 : i32, i32, i32
  }
}

</mosaic_0001>

<llo_original>
// kernel: unet_upconv_block.5
$region0: #{unet_upconv_block.5}
  #allocation0 [shape = 'u32[]', space=smem, size = 0x4, offset = 0x4, fixed_abs, tag = 'smem constant byte address 0x4 - core index']
  #allocation1 [shape = 'u32[144,128]{1,0:T(1,128)}', space=vmem, size = 0x12000, scoped, tag = 'internal scratch']
  %s0 = inlined_call_operand.vmem [shape: bf16[4,512], index: 0, kind: input, shape index: {}]
  %s1 = inlined_call_operand.vmem [shape: bf16[16,4], index: 1, kind: input, shape index: {}]
  %s2 = inlined_call_operand.vmem [shape: f32[16,1], index: 2, kind: input, shape index: {}]
  %s3 = inlined_call_operand.vmem [shape: f32[16,512], index: 3, kind: output, shape index: {}]
  %s4 = sld [smem:[#allocation0]]
  $region22: #{unet_upconv_block.5} parent=0
    _
  %s6 = ssub.s32 1, %s4
  %s7 = scalar_select 0, %s6, %s4
  // Predicated region
  $region2: #{unet_upconv_block.5} parent=0 // pred_check
    _
  $region3: #{unet_upconv_block.5} parent=0 // pred_check_branch
    %9 = sbr.rel (0) target = $region5
  $region4: #{unet_upconv_block.5} parent=0 // pred_region
    _
  $region5: #{unet_upconv_block.5} parent=0 // pred_fallthru
    _
  // Predicated region
  $region6: #{unet_upconv_block.5} parent=0 // pred_check
    _
  $region7: #{unet_upconv_block.5} parent=0 // pred_check_branch
    %11 = sbr.rel (0) target = $region9
  $region8: #{unet_upconv_block.5} parent=0 // pred_region
    _
  $region9: #{unet_upconv_block.5} parent=0 // pred_fallthru
    _
  // Predicated region
  $region10: #{unet_upconv_block.5} parent=0 // pred_check
    _
  $region11: #{unet_upconv_block.5} parent=0 // pred_check_branch
    %13 = sbr.rel (0) target = $region13
  $region12: #{unet_upconv_block.5} parent=0 // pred_region
    _
  $region13: #{unet_upconv_block.5} parent=0 // pred_fallthru
    _
  %v15 = vld [vmem:[%s1] sm:$0xf]
  %v16 = vld [vmem:[%s1 + $0x4] sm:$0xf]
  %v17 = vld [vmem:[%s0] sm:$0xff]
  %v18 = vld [vmem:[%s2] sm:$0xff]
  %v19 = vld [vmem:[%s2 + $0x8] sm:$0xff]
  %21 = vset.pattern.permute.xlu0 0
  %22 = vperm.xlu0 %21, %v18
  %v23 = vpop.permute.xlu0 %22
  %26 = vset.pattern.permute.xlu0 0
  %27 = vperm.xlu0 %26, %v19
  %v28 = vpop.permute.xlu0 %27
  %v32 = vunpack.c.l.b16 %v15
  %v33 = vunpack.c.l.b16 %v16
  %v34 = vpack.c.b16 %v33, %v32
  %v36 = vcombine.high %v17, %v17
  %v38 = vunpack.c.l.s4 1983009808
  %v39 = vunpack.c.0.s8 %v38
  %v40 = vlaneseq
  %v41 = vshrl.u32 %v40, 7
  %v42 = vsub.s32 %v39, %v41
  %v43 = vrot.slane %v17, %v42
  %v45 = vunpack.c.l.s4 1983009808
  %v46 = vunpack.c.0.s8 %v45
  %v47 = vlaneseq
  %v48 = vshrl.u32 %v47, 7
  %v49 = vsub.s32 %v46, %v48
  %v50 = vrot.slane %v36, %v49
  %v51 = vcombine.high %v43, %v43
  %v52 = vcombine.high %v50, %v50
  %vm53 = vcmask 31744
  %v55 = vsel %vm53, %v34, 0
  %vm57 = vcmask 1041408
  %v59 = vsel %vm57, %v43, 0
  %v62 = vsel %vm57, %v51, 0
  %v65 = vsel %vm57, %v50, 0
  %v68 = vsel %vm57, %v52, 0
  %70 = vmatprep.subr.bf16.mxu0 %v62
  %71 = vmatpush1.bf16.msra.mxu0 %v59
  %72 = vmatprep.subr.bf16.mxu0 0
  %73 = vmatpush1.bf16.msra.mxu0 0
  %74 = vmatprep.subr.bf16.mxu0 0
  %75 = vmatpush1.bf16.msra.mxu0 0
  %76 = vmatprep.subr.bf16.mxu0 0
  %77 = vmatpush1.bf16.msra.mxu0 0
  %78 = vmatprep.subr.bf16.mxu0 0
  %79 = vmatpush1.bf16.msra.mxu0 0
  %80 = vmatprep.subr.bf16.mxu0 0
  %81 = vmatpush1.bf16.msra.mxu0 0
  %82 = vmatprep.subr.bf16.mxu0 0
  %83 = vmatpush1.bf16.msra.mxu0 0
  %84 = vmatprep.subr.bf16.mxu0 0
  %85 = vmatpush1.bf16.msra.mxu0 0
  %86 = vmatprep.subr.bf16.mxu0 0
  %87 = vmatpush1.bf16.msra.mxu0 0
  %88 = vmatprep.subr.bf16.mxu0 0
  %89 = vmatpush1.bf16.msra.mxu0 0
  %90 = vmatprep.subr.bf16.mxu0 0
  %91 = vmatpush1.bf16.msra.mxu0 0
  %92 = vmatprep.subr.bf16.mxu0 0
  %93 = vmatpush1.bf16.msra.mxu0 0
  %94 = vmatprep.subr.bf16.mxu0 0
  %95 = vmatpush1.bf16.msra.mxu0 0
  %96 = vmatprep.subr.bf16.mxu0 0
  %97 = vmatpush1.bf16.msra.mxu0 0
  %98 = vmatprep.subr.bf16.mxu0 0
  %99 = vmatpush1.bf16.msra.mxu0 0
  %100 = vmatprep.subr.bf16.mxu0 0
  %101 = vmatpush1.bf16.msra.mxu0 0
  %102 = vmatprep.mubr.bf16.mxu0 0
  %103 = vmatmul.mubr.bf16.gmra.mrb[0].mxu0 %v55
  %v104 = vpop.f32.mrb[0].mxu0
  %v105 = vadd.f32 %v23, %v104
  %v106 = vpop.f32.mrb[0].mxu0
  %v107 = vadd.f32 %v23, %v106
  %v108 = vpop.f32.mrb[0].mxu0
  %v109 = vadd.f32 %v28, %v108
  %v110 = vpop.f32.mrb[0].mxu0
  %v111 = vadd.f32 %v28, %v110
  %112 = vdwg.mxu0
  %113 = vmatprep.subr.bf16.mxu0 %v68
  %114 = vmatpush1.bf16.msra.mxu0 %v65
  %115 = vmatprep.subr.bf16.mxu0 0
  %116 = vmatpush1.bf16.msra.mxu0 0
  %117 = vmatprep.subr.bf16.mxu0 0
  %118 = vmatpush1.bf16.msra.mxu0 0
  %119 = vmatprep.subr.bf16.mxu0 0
  %120 = vmatpush1.bf16.msra.mxu0 0
  %121 = vmatprep.subr.bf16.mxu0 0
  %122 = vmatpush1.bf16.msra.mxu0 0
  %123 = vmatprep.subr.bf16.mxu0 0
  %124 = vmatpush1.bf16.msra.mxu0 0
  %125 = vmatprep.subr.bf16.mxu0 0
  %126 = vmatpush1.bf16.msra.mxu0 0
  %127 = vmatprep.subr.bf16.mxu0 0
  %128 = vmatpush1.bf16.msra.mxu0 0
  %129 = vmatprep.subr.bf16.mxu0 0
  %130 = vmatpush1.bf16.msra.mxu0 0
  %131 = vmatprep.subr.bf16.mxu0 0
  %132 = vmatpush1.bf16.msra.mxu0 0
  %133 = vmatprep.subr.bf16.mxu0 0
  %134 = vmatpush1.bf16.msra.mxu0 0
  %135 = vmatprep.subr.bf16.mxu0 0
  %136 = vmatpush1.bf16.msra.mxu0 0
  %137 = vmatprep.subr.bf16.mxu0 0
  %138 = vmatpush1.bf16.msra.mxu0 0
  %139 = vmatprep.subr.bf16.mxu0 0
  %140 = vmatpush1.bf16.msra.mxu0 0
  %141 = vmatprep.subr.bf16.mxu0 0
  %142 = vmatpush1.bf16.msra.mxu0 0
  %143 = vmatprep.subr.bf16.mxu0 0
  %144 = vmatpush1.bf16.msra.mxu0 0
  %145 = vmatprep.mubr.bf16.mxu0 0
  %146 = vmatmul.mubr.bf16.gmra.mrb[0].mxu0 %v55
  %v147 = vpop.f32.mrb[0].mxu0
  %v148 = vadd.f32 %v23, %v147
  %v149 = vpop.f32.mrb[0].mxu0
  %v150 = vadd.f32 %v23, %v149
  %v151 = vpop.f32.mrb[0].mxu0
  %v152 = vadd.f32 %v28, %v151
  %v153 = vpop.f32.mrb[0].mxu0
  %v154 = vadd.f32 %v28, %v153
  %155 = vdwg.mxu0
  %156 = vst [vmem:[%s3] sm:$0xff] %v105
  %157 = vst [vmem:[%s3 + $0x8] sm:$0xff] %v107
  %158 = vst [vmem:[%s3 + $0x10] sm:$0xff] %v148
  %159 = vst [vmem:[%s3 + $0x18] sm:$0xff] %v150
  %160 = vst [vmem:[%s3 + $0x20] sm:$0xff] %v109
  %161 = vst [vmem:[%s3 + $0x28] sm:$0xff] %v111
  %162 = vst [vmem:[%s3 + $0x30] sm:$0xff] %v152
  %163 = vst [vmem:[%s3 + $0x38] sm:$0xff] %v154
  // Predicated region
  $region14: #{unet_upconv_block.5} parent=0 // pred_check
    _
  $region15: #{unet_upconv_block.5} parent=0 // pred_check_branch
    %165 = sbr.rel (0) target = $region17
  $region16: #{unet_upconv_block.5} parent=0 // pred_region
    _
  $region17: #{unet_upconv_block.5} parent=0 // pred_fallthru
    _
  // Predicated region
  $region18: #{unet_upconv_block.5} parent=0 // pred_check
    _
  $region19: #{unet_upconv_block.5} parent=0 // pred_check_branch
    %167 = sbr.rel (0) target = $region21
  $region20: #{unet_upconv_block.5} parent=0 // pred_region
    _
  $region21: #{unet_upconv_block.5} parent=0 // pred_fallthru
    _

// kernel: unet_upconv_block.7
$region0: #{unet_upconv_block.7}
  #allocation0 [shape = 'u32[]', space=smem, size = 0x4, offset = 0x4, fixed_abs, tag = 'smem constant byte address 0x4 - core index']
  #allocation1 [shape = 'u32[144,128]{1,0:T(1,128)}', space=vmem, size = 0x12000, scoped, tag = 'internal scratch']
  %s0 = inlined_call_operand.vmem [shape: f32[8,2048], index: 0, kind: input, shape index: {}]
  %s1 = inlined_call_operand.vmem [shape: f32[8,1], index: 1, kind: input, shape index: {}]
  %s2 = inlined_call_operand.vmem [shape: f32[8,1], index: 2, kind: input, shape index: {}]
  %s3 = inlined_call_operand.vmem [shape: f32[8,2048], index: 3, kind: output, shape index: {}]
  %s4 = sld [smem:[#allocation0]]
  $region45: #{unet_upconv_block.7} parent=0
    _
  %s6 = ssub.s32 1, %s4
  %s7 = scalar_select 0, %s6, %s4
  loop: start=0, step=1, limit=6
  $region2: #{unet_upconv_block.7} parent=0 // loop_pre_header
    _
  $region3: #{unet_upconv_block.7} parent=0 // loop_header
    %s9 = sphi 0, %s13
    %p10 = scmp.ge.s32.totalorder %s9, 6
    %s19 = sphi 0, %s21
    %s22 = sphi 0, %s19
    %s23 = sphi 0, %s22
    %s39 = sphi 0, %s23
    %s43 = sphi 0, %s43
    %s45 = sphi 0, %s43
    %s46 = sphi 0, %s45
    %s60 = sphi 0, %s46
    %s64 = sphi 0, %s64
    %s66 = sphi 0, %s64
    %s67 = sphi 0, %s66
    %s81 = sphi 0, %s67
    %s87 = sphi 0, %s89
    %s90 = sphi 0, %s87
    %s91 = sphi 0, %s90
    %s107 = sphi 0, %s91
  $region4: #{unet_upconv_block.7} parent=0 // loop_header_branch
    %12 = sbr.rel (%p10) target = $region8
  $region5: #{unet_upconv_block.7} parent=0 // loop_body
    %s14 = ssub.s32 %s9, 1
    %s15 = ssub.s32 %s9, 2
    %s16 = sadd.s32 %s9, 1
    %s17 = ssub.s32 %s9, %s16
    %p18 = scmp.eq.s32.totalorder %s17, 0
    %s20 = sadd.s32 %s19, 1
    %s21 = scalar_select %p18, %s19, %s20
    %p24 = pneg %p18
    %p25 = scmp.eq.s32.totalorder %s9, 3
    %p26 = por %p24, %p25
    %p27 = scmp.ne.s32.totalorder %s19, %s22
    %p28 = scmp.eq.s32.totalorder %s9, 0
    %p29 = por %p27, %p28
    %p30 = scmp.ne.s32.totalorder %s19, %s22
    %p31 = scmp.eq.s32.totalorder %s14, 3
    %p32 = por %p30, %p31
    %p33 = scmp.ne.s32.totalorder %s22, %s23
    %p34 = scmp.eq.s32.totalorder %s14, 0
    %p35 = por %p33, %p34
    %p36 = scmp.ne.s32.totalorder %s22, %s23
    %p37 = scmp.eq.s32.totalorder %s15, 3
    %p38 = por %p36, %p37
    %p40 = scmp.ne.s32.totalorder %s23, %s39
    %p41 = scmp.eq.s32.totalorder %s15, 0
    %p42 = por %p40, %p41
    %s44 = sadd.s32 %s43, 1
    %p47 = scmp.eq.s32.totalorder %s9, 3
    %p48 = scmp.ne.s32.totalorder %s43, %s45
    %p49 = scmp.eq.s32.totalorder %s9, 0
    %p50 = por %p48, %p49
    %p51 = scmp.ne.s32.totalorder %s43, %s45
    %p52 = scmp.eq.s32.totalorder %s14, 3
    %p53 = por %p51, %p52
    %p54 = scmp.ne.s32.totalorder %s45, %s46
    %p55 = scmp.eq.s32.totalorder %s14, 0
    %p56 = por %p54, %p55
    %p57 = scmp.ne.s32.totalorder %s45, %s46
    %p58 = scmp.eq.s32.totalorder %s15, 3
    %p59 = por %p57, %p58
    %p61 = scmp.ne.s32.totalorder %s46, %s60
    %p62 = scmp.eq.s32.totalorder %s15, 0
    %p63 = por %p61, %p62
    %s65 = sadd.s32 %s64, 1
    %p68 = scmp.eq.s32.totalorder %s9, 3
    %p69 = scmp.ne.s32.totalorder %s64, %s66
    %p70 = scmp.eq.s32.totalorder %s9, 0
    %p71 = por %p69, %p70
    %p72 = scmp.ne.s32.totalorder %s64, %s66
    %p73 = scmp.eq.s32.totalorder %s14, 3
    %p74 = por %p72, %p73
    %p75 = scmp.ne.s32.totalorder %s66, %s67
    %p76 = scmp.eq.s32.totalorder %s14, 0
    %p77 = por %p75, %p76
    %p78 = scmp.ne.s32.totalorder %s66, %s67
    %p79 = scmp.eq.s32.totalorder %s15, 3
    %p80 = por %p78, %p79
    %p82 = scmp.ne.s32.totalorder %s67, %s81
    %p83 = scmp.eq.s32.totalorder %s15, 0
    %p84 = por %p82, %p83
    %s85 = ssub.s32 %s9, %s16
    %p86 = scmp.eq.s32.totalorder %s85, 0
    %s88 = sadd.s32 %s87, 1
    %s89 = scalar_select %p86, %s87, %s88
    %p92 = pneg %p86
    %p93 = scmp.eq.s32.totalorder %s9, 3
    %p94 = por %p92, %p93
    %p95 = scmp.ne.s32.totalorder %s87, %s90
    %p96 = scmp.eq.s32.totalorder %s9, 0
    %p97 = por %p95, %p96
    %p98 = scmp.ne.s32.totalorder %s87, %s90
    %p99 = scmp.eq.s32.totalorder %s14, 3
    %p100 = por %p98, %p99
    %p101 = scmp.ne.s32.totalorder %s90, %s91
    %p102 = scmp.eq.s32.totalorder %s14, 0
    %p103 = por %p101, %p102
    %p104 = scmp.ne.s32.totalorder %s90, %s91
    %p105 = scmp.eq.s32.totalorder %s15, 3
    %p106 = por %p104, %p105
    %p108 = scmp.ne.s32.totalorder %s91, %s107
    %p109 = scmp.eq.s32.totalorder %s15, 0
    %p110 = por %p108, %p109
    %p111 = scmp.le.s32.totalorder 1, %s9
    %p112 = scmp.lt.s32.totalorder %s9, 5
    %p113 = pnand %p111, %p112
    %p114 = pneg %p113
    // Predicated region
    $region9: #{unet_upconv_block.7} parent=5 // pred_check
      _
    $region10: #{unet_upconv_block.7} parent=5 // pred_check_branch
      %116 = sbr.rel (%p113) target = $region12
    $region11: #{unet_upconv_block.7} parent=5 // pred_region
      %s117 = ssub.s32 %s9, 1
      // Predicated region
      $region13: #{unet_upconv_block.7} parent=11 // pred_check
        %p118 = pneg %p56
      $region14: #{unet_upconv_block.7} parent=11 // pred_check_branch
        %120 = sbr.rel (%p118) target = $region16
      $region15: #{unet_upconv_block.7} parent=11 // pred_region
        _
      $region16: #{unet_upconv_block.7} parent=11 // pred_fallthru
        _
      // Predicated region
      $region17: #{unet_upconv_block.7} parent=11 // pred_check
        %p121 = pneg %p77
      $region18: #{unet_upconv_block.7} parent=11 // pred_check_branch
        %123 = sbr.rel (%p121) target = $region20
      $region19: #{unet_upconv_block.7} parent=11 // pred_region
        _
      $region20: #{unet_upconv_block.7} parent=11 // pred_fallthru
        _
    $region12: #{unet_upconv_block.7} parent=5 // pred_fallthru
      _
    %p124 = scmp.lt.s32.totalorder %s9, 4
    // Predicated region
    $region21: #{unet_upconv_block.7} parent=5 // pred_check
      %p125 = pneg %p124
    $region22: #{unet_upconv_block.7} parent=5 // pred_check_branch
      %127 = sbr.rel (%p125) target = $region24
    $region23: #{unet_upconv_block.7} parent=5 // pred_region
      // Predicated region
      $region25: #{unet_upconv_block.7} parent=23 // pred_check
        %p128 = pneg %p29
      $region26: #{unet_upconv_block.7} parent=23 // pred_check_branch
        %130 = sbr.rel (%p128) target = $region28
      $region27: #{unet_upconv_block.7} parent=23 // pred_region
        %s131 = smul.u32 4, %s9
        %p132 = scmp.lt.s32.totalorder %s131, 15
        %s133 = scalar_select %p132, %s131, 15
        %s134 = smul.addr %s133, 8
        %s135 = scalar_lea.vmem %s0, %s134
        %s136 = smul.u32 4, %s9
      $region28: #{unet_upconv_block.7} parent=23 // pred_fallthru
        _
    $region24: #{unet_upconv_block.7} parent=5 // pred_fallthru
      _
    %p137 = scmp.le.s32.totalorder 1, %s9
    %p138 = scmp.lt.s32.totalorder %s9, 5
    %p139 = pnand %p137, %p138
    %p140 = pneg %p139
    // Predicated region
    $region29: #{unet_upconv_block.7} parent=5 // pred_check
      _
    $region30: #{unet_upconv_block.7} parent=5 // pred_check_branch
      %142 = sbr.rel (%p139) target = $region32
    $region31: #{unet_upconv_block.7} parent=5 // pred_region
      %s143 = ssub.s32 %s9, 1
      %s144 = smul.u32 4, %s14
      %p145 = scmp.lt.s32.totalorder %s144, 15
      %s146 = scalar_select %p145, %s144, 15
      %s147 = smul.addr %s146, 8
      %s148 = scalar_lea.vmem %s0, %s147
      %p149 = pneg %p35
      %p150 = pneg %p32
      %p151 = pneg %p56
      %p152 = pneg %p53
      %p153 = pneg %p77
      %p154 = pneg %p74
      %p155 = pneg %p103
      %p156 = pneg %p100
      %s157 = smul.u32 4, %s14
      %p158 = scmp.lt.s32.totalorder %s157, 15
      %s159 = scalar_select %p158, %s157, 15
      %s160 = smul.addr %s159, 8
      %s161 = scalar_lea.vmem %s3, %s160
      %s162 = smul.u32 4, %s14
      %p163 = scmp.lt.s32.totalorder %s162, 15
      %s164 = scalar_select %p163, %s162, 15
      %s165 = smul.addr %s164, 8
      %s166 = scalar_lea.vmem %s0, %s165
      %s167 = smul.u32 4, %s14
      %s168 = smul.u32 4, %s14
      %p169 = scmp.lt.s32.totalorder %s168, 15
      %s170 = scalar_select %p169, %s168, 15
      %s171 = smul.addr %s170, 8
      %s172 = scalar_lea.vmem %s3, %s171
      %s173 = smul.u32 4, %s14
      %v174 = vld [vmem:[%s166] sm:$0xff]
      %v175 = vld [vmem:[%s166 + $0x8] sm:$0xff]
      %v176 = vld [vmem:[%s166 + $0x10] sm:$0xff]
      %v177 = vld [vmem:[%s166 + $0x18] sm:$0xff]
      %v178 = vld [vmem:[%s1] sm:$0xff]
      %180 = vset.pattern.permute.xlu0 0
      %181 = vperm.xlu0 %180, %v178
      %v182 = vpop.permute.xlu0 %181
      %v184 = vmul.f32 %v174, %v182
      %v185 = vmul.f32 %v175, %v182
      %v186 = vmul.f32 %v176, %v182
      %v187 = vmul.f32 %v177, %v182
      %v188 = vld [vmem:[%s2] sm:$0xff]
      %190 = vset.pattern.permute.xlu0 0
      %191 = vperm.xlu0 %190, %v188
      %v192 = vpop.permute.xlu0 %191
      %v194 = vadd.f32 %v184, %v192
      %v195 = vadd.f32 %v185, %v192
      %v196 = vadd.f32 %v186, %v192
      %v197 = vadd.f32 %v187, %v192
      %198 = vst [vmem:[%s172] sm:$0xff] %v194
      %199 = vst [vmem:[%s172 + $0x8] sm:$0xff] %v195
      %200 = vst [vmem:[%s172 + $0x10] sm:$0xff] %v196
      %201 = vst [vmem:[%s172 + $0x18] sm:$0xff] %v197
      %s202 = smul.u32 4, %s14
      %p203 = scmp.lt.s32.totalorder %s202, 15
      %s204 = scalar_select %p203, %s202, 15
      %s205 = smul.addr %s204, 8
      %s206 = scalar_lea.vmem %s3, %s205
      // Predicated region
      $region33: #{unet_upconv_block.7} parent=31 // pred_check
        %p207 = pneg %p100
      $region34: #{unet_upconv_block.7} parent=31 // pred_check_branch
        %209 = sbr.rel (%p207) target = $region36
      $region35: #{unet_upconv_block.7} parent=31 // pred_region
        %s210 = smul.u32 4, %s14
      $region36: #{unet_upconv_block.7} parent=31 // pred_fallthru
        _
    $region32: #{unet_upconv_block.7} parent=5 // pred_fallthru
      _
    %p211 = scmp.le.s32.totalorder 2, %s9
    // Predicated region
    $region37: #{unet_upconv_block.7} parent=5 // pred_check
      %p212 = pneg %p211
    $region38: #{unet_upconv_block.7} parent=5 // pred_check_branch
      %214 = sbr.rel (%p212) target = $region40
    $region39: #{unet_upconv_block.7} parent=5 // pred_region
      %s215 = ssub.s32 %s9, 2
      // Predicated region
      $region41: #{unet_upconv_block.7} parent=39 // pred_check
        %p216 = pneg %p106
      $region42: #{unet_upconv_block.7} parent=39 // pred_check_branch
        %218 = sbr.rel (%p216) target = $region44
      $region43: #{unet_upconv_block.7} parent=39 // pred_region
        %s219 = smul.u32 4, %s15
        %p220 = scmp.lt.s32.totalorder %s219, 15
        %s221 = scalar_select %p220, %s219, 15
        %s222 = smul.addr %s221, 8
        %s223 = scalar_lea.vmem %s3, %s222
      $region44: #{unet_upconv_block.7} parent=39 // pred_fallthru
        _
    $region40: #{unet_upconv_block.7} parent=5 // pred_fallthru
      _
  $region6: #{unet_upconv_block.7} parent=0 // loop_footer
    %s13 = sadd.s32 1, %s9
  $region7: #{unet_upconv_block.7} parent=0 // loop_footer_branch
    %8 = sbr.rel target = $region3
  $region8: #{unet_upconv_block.7} parent=0 // loop_exit
    _

// kernel: unet_upconv_block.6
$region0: #{unet_upconv_block.6}
  #allocation0 [shape = 'u32[]', space=smem, size = 0x4, offset = 0x4, fixed_abs, tag = 'smem constant byte address 0x4 - core index']
  #allocation1 [shape = 'u32[144,128]{1,0:T(1,128)}', space=vmem, size = 0x12000, scoped, tag = 'internal scratch']
  %s0 = inlined_call_operand.vmem [shape: bf16[196,2048], index: 0, kind: input, shape index: {}]
  %s1 = inlined_call_operand.vmem [shape: bf16[8,196], index: 1, kind: input, shape index: {}]
  %s2 = inlined_call_operand.vmem [shape: f32[8,1], index: 2, kind: input, shape index: {}]
  %s3 = inlined_call_operand.vmem [shape: f32[8,2048], index: 3, kind: output, shape index: {0}]
  %s4 = inlined_call_operand.vmem [shape: f32[4,8,1], index: 4, kind: output, shape index: {1}]
  %s5 = inlined_call_operand.vmem [shape: f32[4,8,1], index: 5, kind: output, shape index: {2}]
  %6 = xla_tuple %s3, %s4, %s5
  %s7 = sld [smem:[#allocation0]]
  $region84: #{unet_upconv_block.6} parent=0
    _
  %s9 = ssub.s32 1, %s7
  %s10 = scalar_select 0, %s9, %s7
  $region1: #{unet_upconv_block.6} parent=0
    #allocation2 [shape = 'u8[409600]{0}', space=vmem, size = 0x64000, scoped, tag = 'input window, operand 0']
    loop: start=0, step=1, limit=6
    $region2: #{unet_upconv_block.6} parent=1 // loop_pre_header
      _
    $region3: #{unet_upconv_block.6} parent=1 // loop_header
      %s12 = sphi 0, %s16
      %p13 = scmp.ge.s32.totalorder %s12, 6
      %s22 = sphi 0, %s24
      %s25 = sphi 0, %s22
      %s26 = sphi 0, %s25
      %s42 = sphi 0, %s26
      %s46 = sphi 0, %s46
      %s48 = sphi 0, %s46
      %s49 = sphi 0, %s48
      %s63 = sphi 0, %s49
      %s67 = sphi 0, %s67
      %s69 = sphi 0, %s67
      %s70 = sphi 0, %s69
      %s84 = sphi 0, %s70
      %s90 = sphi 0, %s92
      %s93 = sphi 0, %s90
      %s94 = sphi 0, %s93
      %s110 = sphi 0, %s94
      %s116 = sphi 0, %s118
      %s119 = sphi 0, %s116
      %s120 = sphi 0, %s119
      %s136 = sphi 0, %s120
      %s142 = sphi 0, %s144
      %s145 = sphi 0, %s142
      %s146 = sphi 0, %s145
      %s162 = sphi 0, %s146
    $region4: #{unet_upconv_block.6} parent=1 // loop_header_branch
      %15 = sbr.rel (%p13) target = $region8
    $region5: #{unet_upconv_block.6} parent=1 // loop_body
      %s17 = ssub.s32 %s12, 1
      %s18 = ssub.s32 %s12, 2
      %s19 = sadd.s32 %s12, 1
      %s20 = ssub.s32 %s12, %s19
      %p21 = scmp.eq.s32.totalorder %s20, 0
      %s23 = sadd.s32 %s22, 1
      %s24 = scalar_select %p21, %s22, %s23
      %p27 = pneg %p21
      %p28 = scmp.eq.s32.totalorder %s12, 3
      %p29 = por %p27, %p28
      %p30 = scmp.ne.s32.totalorder %s22, %s25
      %p31 = scmp.eq.s32.totalorder %s12, 0
      %p32 = por %p30, %p31
      %p33 = scmp.ne.s32.totalorder %s22, %s25
      %p34 = scmp.eq.s32.totalorder %s17, 3
      %p35 = por %p33, %p34
      %p36 = scmp.ne.s32.totalorder %s25, %s26
      %p37 = scmp.eq.s32.totalorder %s17, 0
      %p38 = por %p36, %p37
      %p39 = scmp.ne.s32.totalorder %s25, %s26
      %p40 = scmp.eq.s32.totalorder %s18, 3
      %p41 = por %p39, %p40
      %p43 = scmp.ne.s32.totalorder %s26, %s42
      %p44 = scmp.eq.s32.totalorder %s18, 0
      %p45 = por %p43, %p44
      %s47 = sadd.s32 %s46, 1
      %p50 = scmp.eq.s32.totalorder %s12, 3
      %p51 = scmp.ne.s32.totalorder %s46, %s48
      %p52 = scmp.eq.s32.totalorder %s12, 0
      %p53 = por %p51, %p52
      %p54 = scmp.ne.s32.totalorder %s46, %s48
      %p55 = scmp.eq.s32.totalorder %s17, 3
      %p56 = por %p54, %p55
      %p57 = scmp.ne.s32.totalorder %s48, %s49
      %p58 = scmp.eq.s32.totalorder %s17, 0
      %p59 = por %p57, %p58
      %p60 = scmp.ne.s32.totalorder %s48, %s49
      %p61 = scmp.eq.s32.totalorder %s18, 3
      %p62 = por %p60, %p61
      %p64 = scmp.ne.s32.totalorder %s49, %s63
      %p65 = scmp.eq.s32.totalorder %s18, 0
      %p66 = por %p64, %p65
      %s68 = sadd.s32 %s67, 1
      %p71 = scmp.eq.s32.totalorder %s12, 3
      %p72 = scmp.ne.s32.totalorder %s67, %s69
      %p73 = scmp.eq.s32.totalorder %s12, 0
      %p74 = por %p72, %p73
      %p75 = scmp.ne.s32.totalorder %s67, %s69
      %p76 = scmp.eq.s32.totalorder %s17, 3
      %p77 = por %p75, %p76
      %p78 = scmp.ne.s32.totalorder %s69, %s70
      %p79 = scmp.eq.s32.totalorder %s17, 0
      %p80 = por %p78, %p79
      %p81 = scmp.ne.s32.totalorder %s69, %s70
      %p82 = scmp.eq.s32.totalorder %s18, 3
      %p83 = por %p81, %p82
      %p85 = scmp.ne.s32.totalorder %s70, %s84
      %p86 = scmp.eq.s32.totalorder %s18, 0
      %p87 = por %p85, %p86
      %s88 = ssub.s32 %s12, %s19
      %p89 = scmp.eq.s32.totalorder %s88, 0
      %s91 = sadd.s32 %s90, 1
      %s92 = scalar_select %p89, %s90, %s91
      %p95 = pneg %p89
      %p96 = scmp.eq.s32.totalorder %s12, 3
      %p97 = por %p95, %p96
      %p98 = scmp.ne.s32.totalorder %s90, %s93
      %p99 = scmp.eq.s32.totalorder %s12, 0
      %p100 = por %p98, %p99
      %p101 = scmp.ne.s32.totalorder %s90, %s93
      %p102 = scmp.eq.s32.totalorder %s17, 3
      %p103 = por %p101, %p102
      %p104 = scmp.ne.s32.totalorder %s93, %s94
      %p105 = scmp.eq.s32.totalorder %s17, 0
      %p106 = por %p104, %p105
      %p107 = scmp.ne.s32.totalorder %s93, %s94
      %p108 = scmp.eq.s32.totalorder %s18, 3
      %p109 = por %p107, %p108
      %p111 = scmp.ne.s32.totalorder %s94, %s110
      %p112 = scmp.eq.s32.totalorder %s18, 0
      %p113 = por %p111, %p112
      %s114 = ssub.s32 %s12, %s19
      %p115 = scmp.eq.s32.totalorder %s114, 0
      %s117 = sadd.s32 %s116, 1
      %s118 = scalar_select %p115, %s116, %s117
      %p121 = pneg %p115
      %p122 = scmp.eq.s32.totalorder %s12, 3
      %p123 = por %p121, %p122
      %p124 = scmp.ne.s32.totalorder %s116, %s119
      %p125 = scmp.eq.s32.totalorder %s12, 0
      %p126 = por %p124, %p125
      %p127 = scmp.ne.s32.totalorder %s116, %s119
      %p128 = scmp.eq.s32.totalorder %s17, 3
      %p129 = por %p127, %p128
      %p130 = scmp.ne.s32.totalorder %s119, %s120
      %p131 = scmp.eq.s32.totalorder %s17, 0
      %p132 = por %p130, %p131
      %p133 = scmp.ne.s32.totalorder %s119, %s120
      %p134 = scmp.eq.s32.totalorder %s18, 3
      %p135 = por %p133, %p134
      %p137 = scmp.ne.s32.totalorder %s120, %s136
      %p138 = scmp.eq.s32.totalorder %s18, 0
      %p139 = por %p137, %p138
      %s140 = ssub.s32 %s12, %s19
      %p141 = scmp.eq.s32.totalorder %s140, 0
      %s143 = sadd.s32 %s142, 1
      %s144 = scalar_select %p141, %s142, %s143
      %p147 = pneg %p141
      %p148 = scmp.eq.s32.totalorder %s12, 3
      %p149 = por %p147, %p148
      %p150 = scmp.ne.s32.totalorder %s142, %s145
      %p151 = scmp.eq.s32.totalorder %s12, 0
      %p152 = por %p150, %p151
      %p153 = scmp.ne.s32.totalorder %s142, %s145
      %p154 = scmp.eq.s32.totalorder %s17, 3
      %p155 = por %p153, %p154
      %p156 = scmp.ne.s32.totalorder %s145, %s146
      %p157 = scmp.eq.s32.totalorder %s17, 0
      %p158 = por %p156, %p157
      %p159 = scmp.ne.s32.totalorder %s145, %s146
      %p160 = scmp.eq.s32.totalorder %s18, 3
      %p161 = por %p159, %p160
      %p163 = scmp.ne.s32.totalorder %s146, %s162
      %p164 = scmp.eq.s32.totalorder %s18, 0
      %p165 = por %p163, %p164
      %p166 = scmp.le.s32.totalorder 1, %s12
      %p167 = scmp.lt.s32.totalorder %s12, 5
      %p168 = pnand %p166, %p167
      %p169 = pneg %p168
      // Predicated region
      $region9: #{unet_upconv_block.6} parent=5 // pred_check
        _
      $region10: #{unet_upconv_block.6} parent=5 // pred_check_branch
        %171 = sbr.rel (%p168) target = $region12
      $region11: #{unet_upconv_block.6} parent=5 // pred_region
        %s172 = ssub.s32 %s12, 1
        // Predicated region
        $region13: #{unet_upconv_block.6} parent=11 // pred_check
          %p173 = pneg %p59
        $region14: #{unet_upconv_block.6} parent=11 // pred_check_branch
          %175 = sbr.rel (%p173) target = $region16
        $region15: #{unet_upconv_block.6} parent=11 // pred_region
          _
        $region16: #{unet_upconv_block.6} parent=11 // pred_fallthru
          _
        // Predicated region
        $region17: #{unet_upconv_block.6} parent=11 // pred_check
          %p176 = pneg %p80
        $region18: #{unet_upconv_block.6} parent=11 // pred_check_branch
          %178 = sbr.rel (%p176) target = $region20
        $region19: #{unet_upconv_block.6} parent=11 // pred_region
          _
        $region20: #{unet_upconv_block.6} parent=11 // pred_fallthru
          _
      $region12: #{unet_upconv_block.6} parent=5 // pred_fallthru
        _
      %p179 = scmp.lt.s32.totalorder %s12, 4
      // Predicated region
      $region21: #{unet_upconv_block.6} parent=5 // pred_check
        %p180 = pneg %p179
      $region22: #{unet_upconv_block.6} parent=5 // pred_check_branch
        %182 = sbr.rel (%p180) target = $region24
      $region23: #{unet_upconv_block.6} parent=5 // pred_region
        // Predicated region
        $region25: #{unet_upconv_block.6} parent=23 // pred_check
          %p183 = pneg %p32
        $region26: #{unet_upconv_block.6} parent=23 // pred_check_branch
          %185 = sbr.rel (%p183) target = $region28
        $region27: #{unet_upconv_block.6} parent=23 // pred_region
          %s186 = sand.u32 %s22, 1
          %s187 = sand.u32 %s22, 1
          %s188 = smul.addr %s187, 400
          %s189 = scalar_lea.vmem [#allocation2], %s188
          %s190 = smul.u32 4, %s12
          %s191 = smul.addr %s190, 4
          %s192 = scalar_lea.vmem %s0, %s191
          // Predicated region
          $region29: #{unet_upconv_block.6} parent=27 // pred_check
            _
          $region30: #{unet_upconv_block.6} parent=27 // pred_check_branch
            %194 = sbr.rel (0) target = $region32
          $region31: #{unet_upconv_block.6} parent=27 // pred_region
            // Predicated region
            $region33: #{unet_upconv_block.6} parent=31 // pred_check
              _
            $region34: #{unet_upconv_block.6} parent=31 // pred_check_branch
              %196 = sbr.rel (0) target = $region36
            $region35: #{unet_upconv_block.6} parent=31 // pred_region
              loop: start=0, step=1, limit=1
              $region37: #{unet_upconv_block.6} parent=35 // loop_pre_header
                _
              $region38: #{unet_upconv_block.6} parent=35 // loop_header
                %s198 = sphi 0, %s202
                %p199 = scmp.ge.s32.totalorder %s198, 1
                %s203 = sphi %s192, %s192
                %s204 = sphi %s189, %s189
              $region39: #{unet_upconv_block.6} parent=35 // loop_header_branch
                %201 = sbr.rel (%p199) target = $region43
              $region40: #{unet_upconv_block.6} parent=35 // loop_body
                %v205 = vld [vmem:[%s203] sm:$0xff]
                %206 = vst [vmem:[%s204] sm:$0xff] %v205
                %v207 = vld [vmem:[%s203 + $0x8] sm:$0xff]
                %208 = vst [vmem:[%s204 + $0x8] sm:$0xff] %v207
                %v209 = vld [vmem:[%s203 + $0x40] sm:$0xff]
                %210 = vst [vmem:[%s204 + $0x10] sm:$0xff] %v209
                %v211 = vld [vmem:[%s203 + $0x48] sm:$0xff]
                %212 = vst [vmem:[%s204 + $0x18] sm:$0xff] %v211
                %v213 = vld [vmem:[%s203 + $0x80] sm:$0xff]
                %214 = vst [vmem:[%s204 + $0x20] sm:$0xff] %v213
                %v215 = vld [vmem:[%s203 + $0x88] sm:$0xff]
                %216 = vst [vmem:[%s204 + $0x28] sm:$0xff] %v215
                %v217 = vld [vmem:[%s203 + $0xc0] sm:$0xff]
                %218 = vst [vmem:[%s204 + $0x30] sm:$0xff] %v217
                %v219 = vld [vmem:[%s203 + $0xc8] sm:$0xff]
                %220 = vst [vmem:[%s204 + $0x38] sm:$0xff] %v219
                %v221 = vld [vmem:[%s203 + $0x100] sm:$0xff]
                %222 = vst [vmem:[%s204 + $0x40] sm:$0xff] %v221
                %v223 = vld [vmem:[%s203 + $0x108] sm:$0xff]
                %224 = vst [vmem:[%s204 + $0x48] sm:$0xff] %v223
                %v225 = vld [vmem:[%s203 + $0x140] sm:$0xff]
                %226 = vst [vmem:[%s204 + $0x50] sm:$0xff] %v225
                %v227 = vld [vmem:[%s203 + $0x148] sm:$0xff]
                %228 = vst [vmem:[%s204 + $0x58] sm:$0xff] %v227
                %v229 = vld [vmem:[%s203 + $0x180] sm:$0xff]
                %230 = vst [vmem:[%s204 + $0x60] sm:$0xff] %v229
                %v231 = vld [vmem:[%s203 + $0x188] sm:$0xff]
                %232 = vst [vmem:[%s204 + $0x68] sm:$0xff] %v231
                %v233 = vld [vmem:[%s203 + $0x1c0] sm:$0xff]
                %234 = vst [vmem:[%s204 + $0x70] sm:$0xff] %v233
                %v235 = vld [vmem:[%s203 + $0x1c8] sm:$0xff]
                %236 = vst [vmem:[%s204 + $0x78] sm:$0xff] %v235
                %v237 = vld [vmem:[%s203 + $0x200] sm:$0xff]
                %238 = vst [vmem:[%s204 + $0x80] sm:$0xff] %v237
                %v239 = vld [vmem:[%s203 + $0x208] sm:$0xff]
                %240 = vst [vmem:[%s204 + $0x88] sm:$0xff] %v239
                %v241 = vld [vmem:[%s203 + $0x240] sm:$0xff]
                %242 = vst [vmem:[%s204 + $0x90] sm:$0xff] %v241
                %v243 = vld [vmem:[%s203 + $0x248] sm:$0xff]
                %244 = vst [vmem:[%s204 + $0x98] sm:$0xff] %v243
                %v245 = vld [vmem:[%s203 + $0x280] sm:$0xff]
                %246 = vst [vmem:[%s204 + $0xa0] sm:$0xff] %v245
                %v247 = vld [vmem:[%s203 + $0x288] sm:$0xff]
                %248 = vst [vmem:[%s204 + $0xa8] sm:$0xff] %v247
                %v249 = vld [vmem:[%s203 + $0x2c0] sm:$0xff]
                %250 = vst [vmem:[%s204 + $0xb0] sm:$0xff] %v249
                %v251 = vld [vmem:[%s203 + $0x2c8] sm:$0xff]
                %252 = vst [vmem:[%s204 + $0xb8] sm:$0xff] %v251
                %v253 = vld [vmem:[%s203 + $0x300] sm:$0xff]
                %254 = vst [vmem:[%s204 + $0xc0] sm:$0xff] %v253
                %v255 = vld [vmem:[%s203 + $0x308] sm:$0xff]
                %256 = vst [vmem:[%s204 + $0xc8] sm:$0xff] %v255
                %v257 = vld [vmem:[%s203 + $0x340] sm:$0xff]
                %258 = vst [vmem:[%s204 + $0xd0] sm:$0xff] %v257
                %v259 = vld [vmem:[%s203 + $0x348] sm:$0xff]
                %260 = vst [vmem:[%s204 + $0xd8] sm:$0xff] %v259
                %v261 = vld [vmem:[%s203 + $0x380] sm:$0xff]
                %262 = vst [vmem:[%s204 + $0xe0] sm:$0xff] %v261
                %v263 = vld [vmem:[%s203 + $0x388] sm:$0xff]
                %264 = vst [vmem:[%s204 + $0xe8] sm:$0xff] %v263
                %v265 = vld [vmem:[%s203 + $0x3c0] sm:$0xff]
                %266 = vst [vmem:[%s204 + $0xf0] sm:$0xff] %v265
                %v267 = vld [vmem:[%s203 + $0x3c8] sm:$0xff]
                %268 = vst [vmem:[%s204 + $0xf8] sm:$0xff] %v267
                %v269 = vld [vmem:[%s203 + $0x400] sm:$0xff]
                %270 = vst [vmem:[%s204 + $0x100] sm:$0xff] %v269
                %v271 = vld [vmem:[%s203 + $0x408] sm:$0xff]
                %272 = vst [vmem:[%s204 + $0x108] sm:$0xff] %v271
                %v273 = vld [vmem:[%s203 + $0x440] sm:$0xff]
                %274 = vst [vmem:[%s204 + $0x110] sm:$0xff] %v273
                %v275 = vld [vmem:[%s203 + $0x448] sm:$0xff]
                %276 = vst [vmem:[%s204 + $0x118] sm:$0xff] %v275
                %v277 = vld [vmem:[%s203 + $0x480] sm:$0xff]
                %278 = vst [vmem:[%s204 + $0x120] sm:$0xff] %v277
                %v279 = vld [vmem:[%s203 + $0x488] sm:$0xff]
                %280 = vst [vmem:[%s204 + $0x128] sm:$0xff] %v279
                %v281 = vld [vmem:[%s203 + $0x4c0] sm:$0xff]
                %282 = vst [vmem:[%s204 + $0x130] sm:$0xff] %v281
                %v283 = vld [vmem:[%s203 + $0x4c8] sm:$0xff]
                %284 = vst [vmem:[%s204 + $0x138] sm:$0xff] %v283
                %v285 = vld [vmem:[%s203 + $0x500] sm:$0xff]
                %286 = vst [vmem:[%s204 + $0x140] sm:$0xff] %v285
                %v287 = vld [vmem:[%s203 + $0x508] sm:$0xff]
                %288 = vst [vmem:[%s204 + $0x148] sm:$0xff] %v287
                %v289 = vld [vmem:[%s203 + $0x540] sm:$0xff]
                %290 = vst [vmem:[%s204 + $0x150] sm:$0xff] %v289
                %v291 = vld [vmem:[%s203 + $0x548] sm:$0xff]
                %292 = vst [vmem:[%s204 + $0x158] sm:$0xff] %v291
                %v293 = vld [vmem:[%s203 + $0x580] sm:$0xff]
                %294 = vst [vmem:[%s204 + $0x160] sm:$0xff] %v293
                %v295 = vld [vmem:[%s203 + $0x588] sm:$0xff]
                %296 = vst [vmem:[%s204 + $0x168] sm:$0xff] %v295
                %v297 = vld [vmem:[%s203 + $0x5c0] sm:$0xff]
                %298 = vst [vmem:[%s204 + $0x170] sm:$0xff] %v297
                %v299 = vld [vmem:[%s203 + $0x5c8] sm:$0xff]
                %300 = vst [vmem:[%s204 + $0x178] sm:$0xff] %v299
                %v301 = vld [vmem:[%s203 + $0x600] sm:$0xff]
                %302 = vst [vmem:[%s204 + $0x180] sm:$0xff] %v301
                %v303 = vld [vmem:[%s203 + $0x608] sm:$0xff]
                %304 = vst [vmem:[%s204 + $0x188] sm:$0xff] %v303
              $region41: #{unet_upconv_block.6} parent=35 // loop_footer
                %s202 = sadd.s32 1, %s198
              $region42: #{unet_upconv_block.6} parent=35 // loop_footer_branch
                %197 = sbr.rel target = $region38
              $region43: #{unet_upconv_block.6} parent=35 // loop_exit
                _
            $region36: #{unet_upconv_block.6} parent=31 // pred_fallthru
              _
            // Predicated region
            $region44: #{unet_upconv_block.6} parent=31 // pred_check
              _
            $region45: #{unet_upconv_block.6} parent=31 // pred_check_branch
              %306 = sbr.rel target = $region47
            $region46: #{unet_upconv_block.6} parent=31 // pred_region
              _
            $region47: #{unet_upconv_block.6} parent=31 // pred_fallthru
              _
          $region32: #{unet_upconv_block.6} parent=27 // pred_fallthru
            _
          %307 = vnop
        $region28: #{unet_upconv_block.6} parent=23 // pred_fallthru
          _
      $region24: #{unet_upconv_block.6} parent=5 // pred_fallthru
        _
      %p308 = scmp.le.s32.totalorder 1, %s12
      %p309 = scmp.lt.s32.totalorder %s12, 5
      %p310 = pnand %p308, %p309
      %p311 = pneg %p310
      // Predicated region
      $region48: #{unet_upconv_block.6} parent=5 // pred_check
        _
      $region49: #{unet_upconv_block.6} parent=5 // pred_check_branch
        %313 = sbr.rel (%p310) target = $region51
      $region50: #{unet_upconv_block.6} parent=5 // pred_region
        %s314 = ssub.s32 %s12, 1
        %s315 = sand.u32 %s25, 1
        %s316 = sand.u32 %s25, 1
        %s317 = smul.addr %s316, 400
        %s318 = scalar_lea.vmem [#allocation2], %s317
        // Predicated region
        $region52: #{unet_upconv_block.6} parent=50 // pred_check
          %p319 = pneg %p38
        $region53: #{unet_upconv_block.6} parent=50 // pred_check_branch
          %321 = sbr.rel (%p319) target = $region55
        $region54: #{unet_upconv_block.6} parent=50 // pred_region
          _
        $region55: #{unet_upconv_block.6} parent=50 // pred_fallthru
          _
        %s322 = sand.u32 %s25, 1
        %s323 = sand.u32 %s25, 1
        %s324 = smul.addr %s323, 400
        %s325 = scalar_lea.vmem [#allocation2], %s324
        %p326 = pneg %p38
        %p327 = pneg %p35
        %p328 = pneg %p59
        %p329 = pneg %p56
        %p330 = pneg %p80
        %p331 = pneg %p77
        %p332 = pneg %p106
        %p333 = pneg %p103
        %s334 = smul.u32 4, %s17
        %p335 = scmp.lt.s32.totalorder %s334, 15
        %s336 = scalar_select %p335, %s334, 15
        %s337 = smul.addr %s336, 8
        %s338 = scalar_lea.vmem %s3, %s337
        %p339 = pneg %p132
        %p340 = pneg %p129
        %p341 = scmp.lt.s32.totalorder %s17, 3
        %s342 = scalar_select %p341, %s17, 3
        %s343 = smul.addr %s342, 8
        %s344 = scalar_lea.vmem %s4, %s343
        %p345 = pneg %p158
        %p346 = pneg %p155
        %p347 = scmp.lt.s32.totalorder %s17, 3
        %s348 = scalar_select %p347, %s17, 3
        %s349 = smul.addr %s348, 8
        %s350 = scalar_lea.vmem %s5, %s349
        %s351 = smul.u32 4, %s17
        %s352 = smul.u32 4, %s17
        %p353 = scmp.lt.s32.totalorder %s352, 15
        %s354 = scalar_select %p353, %s352, 15
        %s355 = smul.addr %s354, 8
        %s356 = scalar_lea.vmem %s3, %s355
        %s357 = smul.u32 4, %s17
        %p358 = scmp.lt.s32.totalorder %s17, 3
        %s359 = scalar_select %p358, %s17, 3
        %s360 = smul.addr %s359, 8
        %s361 = scalar_lea.vmem %s4, %s360
        %p362 = scmp.lt.s32.totalorder %s17, 3
        %s363 = scalar_select %p362, %s17, 3
        %s364 = smul.addr %s363, 8
        %s365 = scalar_lea.vmem %s5, %s364
        %v367 = vld [vmem:[%s1] sm:$0xff]
        %v368 = vld [vmem:[%s318] sm:$0xff]
        %v369 = vld [vmem:[%s318 + $0x8] sm:$0xff]
        %v370 = vld [vmem:[%s318 + $0x10] sm:$0xff]
        %v371 = vld [vmem:[%s318 + $0x18] sm:$0xff]
        %v372 = vld [vmem:[%s318 + $0x20] sm:$0xff]
        %v373 = vld [vmem:[%s318 + $0x28] sm:$0xff]
        %v374 = vld [vmem:[%s318 + $0x30] sm:$0xff]
        %v375 = vld [vmem:[%s318 + $0x38] sm:$0xff]
        %v376 = vld [vmem:[%s318 + $0x40] sm:$0xff]
        %v377 = vld [vmem:[%s318 + $0x48] sm:$0xff]
        %v378 = vld [vmem:[%s318 + $0x50] sm:$0xff]
        %v379 = vld [vmem:[%s318 + $0x58] sm:$0xff]
        %v380 = vld [vmem:[%s318 + $0x60] sm:$0xff]
        %v381 = vld [vmem:[%s318 + $0x68] sm:$0xff]
        %v382 = vld [vmem:[%s318 + $0x70] sm:$0xff]
        %v383 = vld [vmem:[%s318 + $0x78] sm:$0xff]
        %v384 = vld [vmem:[%s318 + $0x80] sm:$0xff]
        %v385 = vld [vmem:[%s318 + $0x88] sm:$0xff]
        %v386 = vld [vmem:[%s318 + $0x90] sm:$0xff]
        %v387 = vld [vmem:[%s318 + $0x98] sm:$0xff]
        %v388 = vld [vmem:[%s318 + $0xa0] sm:$0xff]
        %v389 = vld [vmem:[%s318 + $0xa8] sm:$0xff]
        %v390 = vld [vmem:[%s318 + $0xb0] sm:$0xff]
        %v391 = vld [vmem:[%s318 + $0xb8] sm:$0xff]
        %v392 = vld [vmem:[%s318 + $0xc0] sm:$0xff]
        %v393 = vld [vmem:[%s318 + $0xc8] sm:$0xff]
        %v394 = vld [vmem:[%s318 + $0xd0] sm:$0xff]
        %v395 = vld [vmem:[%s318 + $0xd8] sm:$0xff]
        %v396 = vld [vmem:[%s318 + $0xe0] sm:$0xff]
        %v397 = vld [vmem:[%s318 + $0xe8] sm:$0xff]
        %v398 = vld [vmem:[%s318 + $0xf0] sm:$0xff]
        %v399 = vld [vmem:[%s318 + $0xf8] sm:$0xff]
        %v400 = vld [vmem:[%s318 + $0x100] sm:$0xff]
        %v401 = vld [vmem:[%s318 + $0x108] sm:$0xff]
        %v402 = vld [vmem:[%s318 + $0x110] sm:$0xff]
        %v403 = vld [vmem:[%s318 + $0x118] sm:$0xff]
        %v404 = vld [vmem:[%s318 + $0x120] sm:$0xff]
        %v405 = vld [vmem:[%s318 + $0x128] sm:$0xff]
        %v406 = vld [vmem:[%s318 + $0x130] sm:$0xff]
        %v407 = vld [vmem:[%s318 + $0x138] sm:$0xff]
        %v408 = vld [vmem:[%s318 + $0x140] sm:$0xff]
        %v409 = vld [vmem:[%s318 + $0x148] sm:$0xff]
        %v410 = vld [vmem:[%s318 + $0x150] sm:$0xff]
        %v411 = vld [vmem:[%s318 + $0x158] sm:$0xff]
        %v412 = vld [vmem:[%s318 + $0x160] sm:$0xff]
        %v413 = vld [vmem:[%s318 + $0x168] sm:$0xff]
        %v414 = vld [vmem:[%s318 + $0x170] sm:$0xff]
        %v415 = vld [vmem:[%s318 + $0x178] sm:$0xff]
        %v416 = vld [vmem:[%s318 + $0x180] sm:$0x33]
        %v417 = vld [vmem:[%s318 + $0x188] sm:$0x33]
        %v418 = vld [vmem:[%s2] sm:$0xff]
        %420 = vset.pattern.permute.xlu0 0
        %421 = vperm.xlu0 %420, %v418
        %v422 = vpop.permute.xlu0 %421
        %v425 = vunpack.c.l.b16 %v367
        %v426 = vunpack.c.h.b16 %v367
        %v427 = vpack.c.b16 %v425, %v425
        %v428 = vpack.c.b16 %v426, %v426
        %v480 = vunpack.c.l.b16 %v368
        %v481 = vunpack.c.h.b16 %v368
        %v482 = vunpack.c.l.b16 %v369
        %v483 = vunpack.c.h.b16 %v369
        %v484 = vunpack.c.l.b16 %v370
        %v485 = vunpack.c.h.b16 %v370
        %v486 = vunpack.c.l.b16 %v371
        %v487 = vunpack.c.h.b16 %v371
        %v488 = vunpack.c.l.b16 %v372
        %v489 = vunpack.c.h.b16 %v372
        %v490 = vunpack.c.l.b16 %v373
        %v491 = vunpack.c.h.b16 %v373
        %v492 = vunpack.c.l.b16 %v374
        %v493 = vunpack.c.h.b16 %v374
        %v494 = vunpack.c.l.b16 %v375
        %v495 = vunpack.c.h.b16 %v375
        %v496 = vunpack.c.l.b16 %v376
        %v497 = vunpack.c.h.b16 %v376
        %v498 = vunpack.c.l.b16 %v377
        %v499 = vunpack.c.h.b16 %v377
        %v500 = vunpack.c.l.b16 %v378
        %v501 = vunpack.c.h.b16 %v378
        %v502 = vunpack.c.l.b16 %v379
        %v503 = vunpack.c.h.b16 %v379
        %v504 = vunpack.c.l.b16 %v380
        %v505 = vunpack.c.h.b16 %v380
        %v506 = vunpack.c.l.b16 %v381
        %v507 = vunpack.c.h.b16 %v381
        %v508 = vunpack.c.l.b16 %v382
        %v509 = vunpack.c.h.b16 %v382
        %v510 = vunpack.c.l.b16 %v383
        %v511 = vunpack.c.h.b16 %v383
        %v512 = vunpack.c.l.b16 %v384
        %v513 = vunpack.c.h.b16 %v384
        %v514 = vunpack.c.l.b16 %v385
        %v515 = vunpack.c.h.b16 %v385
        %v516 = vunpack.c.l.b16 %v386
        %v517 = vunpack.c.h.b16 %v386
        %v518 = vunpack.c.l.b16 %v387
        %v519 = vunpack.c.h.b16 %v387
        %v520 = vunpack.c.l.b16 %v388
        %v521 = vunpack.c.h.b16 %v388
        %v522 = vunpack.c.l.b16 %v389
        %v523 = vunpack.c.h.b16 %v389
        %v524 = vunpack.c.l.b16 %v390
        %v525 = vunpack.c.h.b16 %v390
        %v526 = vunpack.c.l.b16 %v391
        %v527 = vunpack.c.h.b16 %v391
        %v528 = vunpack.c.l.b16 %v392
        %v529 = vunpack.c.h.b16 %v392
        %v530 = vunpack.c.l.b16 %v393
        %v531 = vunpack.c.h.b16 %v393
        %v532 = vunpack.c.l.b16 %v394
        %v533 = vunpack.c.h.b16 %v394
        %v534 = vunpack.c.l.b16 %v395
        %v535 = vunpack.c.h.b16 %v395
        %v536 = vunpack.c.l.b16 %v396
        %v537 = vunpack.c.h.b16 %v396
        %v538 = vunpack.c.l.b16 %v397
        %v539 = vunpack.c.h.b16 %v397
        %v540 = vunpack.c.l.b16 %v398
        %v541 = vunpack.c.h.b16 %v398
        %v542 = vunpack.c.l.b16 %v399
        %v543 = vunpack.c.h.b16 %v399
        %v544 = vunpack.c.l.b16 %v400
        %v545 = vunpack.c.h.b16 %v400
        %v546 = vunpack.c.l.b16 %v401
        %v547 = vunpack.c.h.b16 %v401
        %v548 = vunpack.c.l.b16 %v402
        %v549 = vunpack.c.h.b16 %v402
        %v550 = vunpack.c.l.b16 %v403
        %v551 = vunpack.c.h.b16 %v403
        %v552 = vunpack.c.l.b16 %v404
        %v553 = vunpack.c.h.b16 %v404
        %v554 = vunpack.c.l.b16 %v405
        %v555 = vunpack.c.h.b16 %v405
        %v556 = vunpack.c.l.b16 %v406
        %v557 = vunpack.c.h.b16 %v406
        %v558 = vunpack.c.l.b16 %v407
        %v559 = vunpack.c.h.b16 %v407
        %v560 = vunpack.c.l.b16 %v408
        %v561 = vunpack.c.h.b16 %v408
        %v562 = vunpack.c.l.b16 %v409
        %v563 = vunpack.c.h.b16 %v409
        %v564 = vunpack.c.l.b16 %v410
        %v565 = vunpack.c.h.b16 %v410
        %v566 = vunpack.c.l.b16 %v411
        %v567 = vunpack.c.h.b16 %v411
        %v568 = vunpack.c.l.b16 %v412
        %v569 = vunpack.c.h.b16 %v412
        %v570 = vunpack.c.l.b16 %v413
        %v571 = vunpack.c.h.b16 %v413
        %v572 = vunpack.c.l.b16 %v414
        %v573 = vunpack.c.h.b16 %v414
        %v574 = vunpack.c.l.b16 %v415
        %v575 = vunpack.c.h.b16 %v415
        %v576 = vunpack.c.l.b16 %v416
        %v577 = vunpack.c.h.b16 %v416
        %v578 = vunpack.c.l.b16 %v417
        %v579 = vunpack.c.h.b16 %v417
        %v580 = vpack.c.b16 %v484, %v480
        %v581 = vpack.c.b16 %v485, %v481
        %v582 = vpack.c.b16 %v486, %v482
        %v583 = vpack.c.b16 %v487, %v483
        %v584 = vpack.c.b16 %v492, %v488
        %v585 = vpack.c.b16 %v493, %v489
        %v586 = vpack.c.b16 %v494, %v490
        %v587 = vpack.c.b16 %v495, %v491
        %v588 = vpack.c.b16 %v500, %v496
        %v589 = vpack.c.b16 %v501, %v497
        %v590 = vpack.c.b16 %v502, %v498
        %v591 = vpack.c.b16 %v503, %v499
        %v592 = vpack.c.b16 %v508, %v504
        %v593 = vpack.c.b16 %v509, %v505
        %v594 = vpack.c.b16 %v510, %v506
        %v595 = vpack.c.b16 %v511, %v507
        %v596 = vpack.c.b16 %v516, %v512
        %v597 = vpack.c.b16 %v517, %v513
        %v598 = vpack.c.b16 %v518, %v514
        %v599 = vpack.c.b16 %v519, %v515
        %v600 = vpack.c.b16 %v524, %v520
        %v601 = vpack.c.b16 %v525, %v521
        %v602 = vpack.c.b16 %v526, %v522
        %v603 = vpack.c.b16 %v527, %v523
        %v604 = vpack.c.b16 %v532, %v528
        %v605 = vpack.c.b16 %v533, %v529
        %v606 = vpack.c.b16 %v534, %v530
        %v607 = vpack.c.b16 %v535, %v531
        %v608 = vpack.c.b16 %v540, %v536
        %v609 = vpack.c.b16 %v541, %v537
        %v610 = vpack.c.b16 %v542, %v538
        %v611 = vpack.c.b16 %v543, %v539
        %v612 = vpack.c.b16 %v548, %v544
        %v613 = vpack.c.b16 %v549, %v545
        %v614 = vpack.c.b16 %v550, %v546
        %v615 = vpack.c.b16 %v551, %v547
        %v616 = vpack.c.b16 %v556, %v552
        %v617 = vpack.c.b16 %v557, %v553
        %v618 = vpack.c.b16 %v558, %v554
        %v619 = vpack.c.b16 %v559, %v555
        %v620 = vpack.c.b16 %v564, %v560
        %v621 = vpack.c.b16 %v565, %v561
        %v622 = vpack.c.b16 %v566, %v562
        %v623 = vpack.c.b16 %v567, %v563
        %v624 = vpack.c.b16 %v572, %v568
        %v625 = vpack.c.b16 %v573, %v569
        %v626 = vpack.c.b16 %v574, %v570
        %v627 = vpack.c.b16 %v575, %v571
        %v628 = vpack.c.b16 %v576, %v576
        %v629 = vpack.c.b16 %v577, %v577
        %v630 = vpack.c.b16 %v578, %v578
        %v631 = vpack.c.b16 %v579, %v579
        %vm680 = vcmask 556032
        %v682 = vsel %vm680, %v428, 0
        %vm684 = vcmask 1041408
        %v686 = vsel %vm684, %v628, 0
        %v689 = vsel %vm684, %v629, 0
        %v692 = vsel %vm684, %v630, 0
        %v695 = vsel %vm684, %v631, 0
        %697 = vmatprep.subr.bf16.mxu0 %v581
        %698 = vmatpush1.bf16.msra.mxu0 %v580
        %699 = vmatprep.subr.bf16.mxu0 %v585
        %700 = vmatpush1.bf16.msra.mxu0 %v584
        %701 = vmatprep.subr.bf16.mxu0 %v589
        %702 = vmatpush1.bf16.msra.mxu0 %v588
        %703 = vmatprep.subr.bf16.mxu0 %v593
        %704 = vmatpush1.bf16.msra.mxu0 %v592
        %705 = vmatprep.subr.bf16.mxu0 %v597
        %706 = vmatpush1.bf16.msra.mxu0 %v596
        %707 = vmatprep.subr.bf16.mxu0 %v601
        %708 = vmatpush1.bf16.msra.mxu0 %v600
        %709 = vmatprep.subr.bf16.mxu0 %v605
        %710 = vmatpush1.bf16.msra.mxu0 %v604
        %711 = vmatprep.subr.bf16.mxu0 %v609
        %712 = vmatpush1.bf16.msra.mxu0 %v608
        %713 = vmatprep.subr.bf16.mxu0 %v613
        %714 = vmatpush1.bf16.msra.mxu0 %v612
        %715 = vmatprep.subr.bf16.mxu0 %v617
        %716 = vmatpush1.bf16.msra.mxu0 %v616
        %717 = vmatprep.subr.bf16.mxu0 %v621
        %718 = vmatpush1.bf16.msra.mxu0 %v620
        %719 = vmatprep.subr.bf16.mxu0 %v625
        %720 = vmatpush1.bf16.msra.mxu0 %v624
        %721 = vmatprep.subr.bf16.mxu0 %v689
        %722 = vmatpush1.bf16.msra.mxu0 %v686
        %723 = vmatprep.subr.bf16.mxu0 0
        %724 = vmatpush1.bf16.msra.mxu0 0
        %725 = vmatprep.subr.bf16.mxu0 0
        %726 = vmatpush1.bf16.msra.mxu0 0
        %727 = vmatprep.subr.bf16.mxu0 0
        %728 = vmatpush1.bf16.msra.mxu0 0
        %729 = vmatprep.mubr.bf16.mxu0 %v682
        %730 = vmatmul.mubr.bf16.gmra.mrb[0].mxu0 %v427
        %v731 = vpop.f32.mrb[0].mxu0
        %v732 = vadd.f32 %v422, %v731
        %v733 = vpop.f32.mrb[0].mxu0
        %v734 = vadd.f32 %v422, %v733
        %v735 = vpop.f32.mrb[0].mxu0
        %v736 = vpop.f32.mrb[0].mxu0
        %737 = vdwg.mxu0
        %738 = vmatprep.subr.bf16.mxu0 %v583
        %739 = vmatpush1.bf16.msra.mxu0 %v582
        %740 = vmatprep.subr.bf16.mxu0 %v587
        %741 = vmatpush1.bf16.msra.mxu0 %v586
        %742 = vmatprep.subr.bf16.mxu0 %v591
        %743 = vmatpush1.bf16.msra.mxu0 %v590
        %744 = vmatprep.subr.bf16.mxu0 %v595
        %745 = vmatpush1.bf16.msra.mxu0 %v594
        %746 = vmatprep.subr.bf16.mxu0 %v599
        %747 = vmatpush1.bf16.msra.mxu0 %v598
        %748 = vmatprep.subr.bf16.mxu0 %v603
        %749 = vmatpush1.bf16.msra.mxu0 %v602
        %750 = vmatprep.subr.bf16.mxu0 %v607
        %751 = vmatpush1.bf16.msra.mxu0 %v606
        %752 = vmatprep.subr.bf16.mxu0 %v611
        %753 = vmatpush1.bf16.msra.mxu0 %v610
        %754 = vmatprep.subr.bf16.mxu0 %v615
        %755 = vmatpush1.bf16.msra.mxu0 %v614
        %756 = vmatprep.subr.bf16.mxu0 %v619
        %757 = vmatpush1.bf16.msra.mxu0 %v618
        %758 = vmatprep.subr.bf16.mxu0 %v623
        %759 = vmatpush1.bf16.msra.mxu0 %v622
        %760 = vmatprep.subr.bf16.mxu0 %v627
        %761 = vmatpush1.bf16.msra.mxu0 %v626
        %762 = vmatprep.subr.bf16.mxu0 %v695
        %763 = vmatpush1.bf16.msra.mxu0 %v692
        %764 = vmatprep.subr.bf16.mxu0 0
        %765 = vmatpush1.bf16.msra.mxu0 0
        %766 = vmatprep.subr.bf16.mxu0 0
        %767 = vmatpush1.bf16.msra.mxu0 0
        %768 = vmatprep.subr.bf16.mxu0 0
        %769 = vmatpush1.bf16.msra.mxu0 0
        %770 = vmatprep.mubr.bf16.mxu0 %v682
        %771 = vmatmul.mubr.bf16.gmra.mrb[0].mxu0 %v427
        %v772 = vpop.f32.mrb[0].mxu0
        %v773 = vadd.f32 %v422, %v772
        %v774 = vpop.f32.mrb[0].mxu0
        %v775 = vadd.f32 %v422, %v774
        %v776 = vpop.f32.mrb[0].mxu0
        %v777 = vpop.f32.mrb[0].mxu0
        %778 = vdwg.mxu0
        %v779 = vmax.f32 %v732, 0.0
        %v780 = vmax.f32 %v734, 0.0
        %v781 = vmax.f32 %v773, 0.0
        %v782 = vmax.f32 %v775, 0.0
        %783 = vst [vmem:[%s356] sm:$0xff] %v779
        %784 = vst [vmem:[%s356 + $0x8] sm:$0xff] %v780
        %785 = vst [vmem:[%s356 + $0x10] sm:$0xff] %v781
        %786 = vst [vmem:[%s356 + $0x18] sm:$0xff] %v782
        %v787 = vadd.f32 %v779, %v780
        %v788 = vadd.f32 %v787, %v781
        %v789 = vadd.f32 %v788, %v782
        %790 = vadd.xlane.f32.xlu0 %v789
        %v791 = vpop.xlane.xlu0 %790
        %vm792 = vcmask 7168
        %793 = vst.msk [vmem:[%s361] sm:$0xff] %vm792, %v791
        %v794 = vmul.f32 %v779, %v779
        %v795 = vmul.f32 %v780, %v780
        %v796 = vmul.f32 %v781, %v781
        %v797 = vmul.f32 %v782, %v782
        %v798 = vadd.f32 %v794, %v795
        %v799 = vadd.f32 %v798, %v796
        %v800 = vadd.f32 %v799, %v797
        %801 = vadd.xlane.f32.xlu0 %v800
        %v802 = vpop.xlane.xlu0 %801
        %803 = vst.msk [vmem:[%s365] sm:$0xff] %vm792, %v802
        %s804 = smul.u32 4, %s17
        %p805 = scmp.lt.s32.totalorder %s804, 15
        %s806 = scalar_select %p805, %s804, 15
        %s807 = smul.addr %s806, 8
        %s808 = scalar_lea.vmem %s3, %s807
        %p809 = scmp.lt.s32.totalorder %s17, 3
        %s810 = scalar_select %p809, %s17, 3
        %s811 = smul.addr %s810, 8
        %s812 = scalar_lea.vmem %s4, %s811
        %p813 = scmp.lt.s32.totalorder %s17, 3
        %s814 = scalar_select %p813, %s17, 3
        %s815 = smul.addr %s814, 8
        %s816 = scalar_lea.vmem %s5, %s815
        // Predicated region
        $region56: #{unet_upconv_block.6} parent=50 // pred_check
          %p817 = pneg %p103
        $region57: #{unet_upconv_block.6} parent=50 // pred_check_branch
          %819 = sbr.rel (%p817) target = $region59
        $region58: #{unet_upconv_block.6} parent=50 // pred_region
          %s820 = smul.u32 4, %s17
        $region59: #{unet_upconv_block.6} parent=50 // pred_fallthru
          _
        // Predicated region
        $region60: #{unet_upconv_block.6} parent=50 // pred_check
          %p821 = pneg %p129
        $region61: #{unet_upconv_block.6} parent=50 // pred_check_branch
          %823 = sbr.rel (%p821) target = $region63
        $region62: #{unet_upconv_block.6} parent=50 // pred_region
          _
        $region63: #{unet_upconv_block.6} parent=50 // pred_fallthru
          _
        // Predicated region
        $region64: #{unet_upconv_block.6} parent=50 // pred_check
          %p824 = pneg %p155
        $region65: #{unet_upconv_block.6} parent=50 // pred_check_branch
          %826 = sbr.rel (%p824) target = $region67
        $region66: #{unet_upconv_block.6} parent=50 // pred_region
          _
        $region67: #{unet_upconv_block.6} parent=50 // pred_fallthru
          _
      $region51: #{unet_upconv_block.6} parent=5 // pred_fallthru
        _
      %p827 = scmp.le.s32.totalorder 2, %s12
      // Predicated region
      $region68: #{unet_upconv_block.6} parent=5 // pred_check
        %p828 = pneg %p827
      $region69: #{unet_upconv_block.6} parent=5 // pred_check_branch
        %830 = sbr.rel (%p828) target = $region71
      $region70: #{unet_upconv_block.6} parent=5 // pred_region
        %s831 = ssub.s32 %s12, 2
        // Predicated region
        $region72: #{unet_upconv_block.6} parent=70 // pred_check
          %p832 = pneg %p109
        $region73: #{unet_upconv_block.6} parent=70 // pred_check_branch
          %834 = sbr.rel (%p832) target = $region75
        $region74: #{unet_upconv_block.6} parent=70 // pred_region
          %s835 = smul.u32 4, %s18
          %p836 = scmp.lt.s32.totalorder %s835, 15
          %s837 = scalar_select %p836, %s835, 15
          %s838 = smul.addr %s837, 8
          %s839 = scalar_lea.vmem %s3, %s838
        $region75: #{unet_upconv_block.6} parent=70 // pred_fallthru
          _
        // Predicated region
        $region76: #{unet_upconv_block.6} parent=70 // pred_check
          %p840 = pneg %p135
        $region77: #{unet_upconv_block.6} parent=70 // pred_check_branch
          %842 = sbr.rel (%p840) target = $region79
        $region78: #{unet_upconv_block.6} parent=70 // pred_region
          %p843 = scmp.lt.s32.totalorder %s18, 3
          %s844 = scalar_select %p843, %s18, 3
          %s845 = smul.addr %s844, 8
          %s846 = scalar_lea.vmem %s4, %s845
        $region79: #{unet_upconv_block.6} parent=70 // pred_fallthru
          _
        // Predicated region
        $region80: #{unet_upconv_block.6} parent=70 // pred_check
          %p847 = pneg %p161
        $region81: #{unet_upconv_block.6} parent=70 // pred_check_branch
          %849 = sbr.rel (%p847) target = $region83
        $region82: #{unet_upconv_block.6} parent=70 // pred_region
          %p850 = scmp.lt.s32.totalorder %s18, 3
          %s851 = scalar_select %p850, %s18, 3
          %s852 = smul.addr %s851, 8
          %s853 = scalar_lea.vmem %s5, %s852
        $region83: #{unet_upconv_block.6} parent=70 // pred_fallthru
          _
      $region71: #{unet_upconv_block.6} parent=5 // pred_fallthru
        _
    $region6: #{unet_upconv_block.6} parent=1 // loop_footer
      %s16 = sadd.s32 1, %s12
    $region7: #{unet_upconv_block.6} parent=1 // loop_footer_branch
      %11 = sbr.rel target = $region3
    $region8: #{unet_upconv_block.6} parent=1 // loop_exit
      _

// kernel: unet_upconv_block.8
$region0: #{unet_upconv_block.8}
  #allocation0 [shape = 'u32[]', space=smem, size = 0x4, offset = 0x4, fixed_abs, tag = 'smem constant byte address 0x4 - core index']
  #allocation1 [shape = 'u32[144,128]{1,0:T(1,128)}', space=vmem, size = 0x12000, scoped, tag = 'internal scratch']
  %s0 = inlined_call_operand.vmem [shape: bf16[392,2048], index: 0, kind: input, shape index: {}]
  %s1 = inlined_call_operand.vmem [shape: bf16[8,392], index: 1, kind: input, shape index: {}]
  %s2 = inlined_call_operand.vmem [shape: f32[8,1], index: 2, kind: input, shape index: {}]
  %s3 = inlined_call_operand.vmem [shape: f32[8,2048], index: 3, kind: output, shape index: {0}]
  %s4 = inlined_call_operand.vmem [shape: f32[4,8,1], index: 4, kind: output, shape index: {1}]
  %s5 = inlined_call_operand.vmem [shape: f32[4,8,1], index: 5, kind: output, shape index: {2}]
  %6 = xla_tuple %s3, %s4, %s5
  %s7 = sld [smem:[#allocation0]]
  $region84: #{unet_upconv_block.8} parent=0
    _
  %s9 = ssub.s32 1, %s7
  %s10 = scalar_select 0, %s9, %s7
  $region1: #{unet_upconv_block.8} parent=0
    #allocation2 [shape = 'u8[802816]{0}', space=vmem, size = 0xc4000, scoped, tag = 'input window, operand 0']
    loop: start=0, step=1, limit=6
    $region2: #{unet_upconv_block.8} parent=1 // loop_pre_header
      _
    $region3: #{unet_upconv_block.8} parent=1 // loop_header
      %s12 = sphi 0, %s16
      %p13 = scmp.ge.s32.totalorder %s12, 6
      %s22 = sphi 0, %s24
      %s25 = sphi 0, %s22
      %s26 = sphi 0, %s25
      %s42 = sphi 0, %s26
      %s46 = sphi 0, %s46
      %s48 = sphi 0, %s46
      %s49 = sphi 0, %s48
      %s63 = sphi 0, %s49
      %s67 = sphi 0, %s67
      %s69 = sphi 0, %s67
      %s70 = sphi 0, %s69
      %s84 = sphi 0, %s70
      %s90 = sphi 0, %s92
      %s93 = sphi 0, %s90
      %s94 = sphi 0, %s93
      %s110 = sphi 0, %s94
      %s116 = sphi 0, %s118
      %s119 = sphi 0, %s116
      %s120 = sphi 0, %s119
      %s136 = sphi 0, %s120
      %s142 = sphi 0, %s144
      %s145 = sphi 0, %s142
      %s146 = sphi 0, %s145
      %s162 = sphi 0, %s146
    $region4: #{unet_upconv_block.8} parent=1 // loop_header_branch
      %15 = sbr.rel (%p13) target = $region8
    $region5: #{unet_upconv_block.8} parent=1 // loop_body
      %s17 = ssub.s32 %s12, 1
      %s18 = ssub.s32 %s12, 2
      %s19 = sadd.s32 %s12, 1
      %s20 = ssub.s32 %s12, %s19
      %p21 = scmp.eq.s32.totalorder %s20, 0
      %s23 = sadd.s32 %s22, 1
      %s24 = scalar_select %p21, %s22, %s23
      %p27 = pneg %p21
      %p28 = scmp.eq.s32.totalorder %s12, 3
      %p29 = por %p27, %p28
      %p30 = scmp.ne.s32.totalorder %s22, %s25
      %p31 = scmp.eq.s32.totalorder %s12, 0
      %p32 = por %p30, %p31
      %p33 = scmp.ne.s32.totalorder %s22, %s25
      %p34 = scmp.eq.s32.totalorder %s17, 3
      %p35 = por %p33, %p34
      %p36 = scmp.ne.s32.totalorder %s25, %s26
      %p37 = scmp.eq.s32.totalorder %s17, 0
      %p38 = por %p36, %p37
      %p39 = scmp.ne.s32.totalorder %s25, %s26
      %p40 = scmp.eq.s32.totalorder %s18, 3
      %p41 = por %p39, %p40
      %p43 = scmp.ne.s32.totalorder %s26, %s42
      %p44 = scmp.eq.s32.totalorder %s18, 0
      %p45 = por %p43, %p44
      %s47 = sadd.s32 %s46, 1
      %p50 = scmp.eq.s32.totalorder %s12, 3
      %p51 = scmp.ne.s32.totalorder %s46, %s48
      %p52 = scmp.eq.s32.totalorder %s12, 0
      %p53 = por %p51, %p52
      %p54 = scmp.ne.s32.totalorder %s46, %s48
      %p55 = scmp.eq.s32.totalorder %s17, 3
      %p56 = por %p54, %p55
      %p57 = scmp.ne.s32.totalorder %s48, %s49
      %p58 = scmp.eq.s32.totalorder %s17, 0
      %p59 = por %p57, %p58
      %p60 = scmp.ne.s32.totalorder %s48, %s49
      %p61 = scmp.eq.s32.totalorder %s18, 3
      %p62 = por %p60, %p61
      %p64 = scmp.ne.s32.totalorder %s49, %s63
      %p65 = scmp.eq.s32.totalorder %s18, 0
      %p66 = por %p64, %p65
      %s68 = sadd.s32 %s67, 1
      %p71 = scmp.eq.s32.totalorder %s12, 3
      %p72 = scmp.ne.s32.totalorder %s67, %s69
      %p73 = scmp.eq.s32.totalorder %s12, 0
      %p74 = por %p72, %p73
      %p75 = scmp.ne.s32.totalorder %s67, %s69
      %p76 = scmp.eq.s32.totalorder %s17, 3
      %p77 = por %p75, %p76
      %p78 = scmp.ne.s32.totalorder %s69, %s70
      %p79 = scmp.eq.s32.totalorder %s17, 0
      %p80 = por %p78, %p79
      %p81 = scmp.ne.s32.totalorder %s69, %s70
      %p82 = scmp.eq.s32.totalorder %s18, 3
      %p83 = por %p81, %p82
      %p85 = scmp.ne.s32.totalorder %s70, %s84
      %p86 = scmp.eq.s32.totalorder %s18, 0
      %p87 = por %p85, %p86
      %s88 = ssub.s32 %s12, %s19
      %p89 = scmp.eq.s32.totalorder %s88, 0
      %s91 = sadd.s32 %s90, 1
      %s92 = scalar_select %p89, %s90, %s91
      %p95 = pneg %p89
      %p96 = scmp.eq.s32.totalorder %s12, 3
      %p97 = por %p95, %p96
      %p98 = scmp.ne.s32.totalorder %s90, %s93
      %p99 = scmp.eq.s32.totalorder %s12, 0
      %p100 = por %p98, %p99
      %p101 = scmp.ne.s32.totalorder %s90, %s93
      %p102 = scmp.eq.s32.totalorder %s17, 3
      %p103 = por %p101, %p102
      %p104 = scmp.ne.s32.totalorder %s93, %s94
      %p105 = scmp.eq.s32.totalorder %s17, 0
      %p106 = por %p104, %p105
      %p107 = scmp.ne.s32.totalorder %s93, %s94
      %p108 = scmp.eq.s32.totalorder %s18, 3
      %p109 = por %p107, %p108
      %p111 = scmp.ne.s32.totalorder %s94, %s110
      %p112 = scmp.eq.s32.totalorder %s18, 0
      %p113 = por %p111, %p112
      %s114 = ssub.s32 %s12, %s19
      %p115 = scmp.eq.s32.totalorder %s114, 0
      %s117 = sadd.s32 %s116, 1
      %s118 = scalar_select %p115, %s116, %s117
      %p121 = pneg %p115
      %p122 = scmp.eq.s32.totalorder %s12, 3
      %p123 = por %p121, %p122
      %p124 = scmp.ne.s32.totalorder %s116, %s119
      %p125 = scmp.eq.s32.totalorder %s12, 0
      %p126 = por %p124, %p125
      %p127 = scmp.ne.s32.totalorder %s116, %s119
      %p128 = scmp.eq.s32.totalorder %s17, 3
      %p129 = por %p127, %p128
      %p130 = scmp.ne.s32.totalorder %s119, %s120
      %p131 = scmp.eq.s32.totalorder %s17, 0
      %p132 = por %p130, %p131
      %p133 = scmp.ne.s32.totalorder %s119, %s120
      %p134 = scmp.eq.s32.totalorder %s18, 3
      %p135 = por %p133, %p134
      %p137 = scmp.ne.s32.totalorder %s120, %s136
      %p138 = scmp.eq.s32.totalorder %s18, 0
      %p139 = por %p137, %p138
      %s140 = ssub.s32 %s12, %s19
      %p141 = scmp.eq.s32.totalorder %s140, 0
      %s143 = sadd.s32 %s142, 1
      %s144 = scalar_select %p141, %s142, %s143
      %p147 = pneg %p141
      %p148 = scmp.eq.s32.totalorder %s12, 3
      %p149 = por %p147, %p148
      %p150 = scmp.ne.s32.totalorder %s142, %s145
      %p151 = scmp.eq.s32.totalorder %s12, 0
      %p152 = por %p150, %p151
      %p153 = scmp.ne.s32.totalorder %s142, %s145
      %p154 = scmp.eq.s32.totalorder %s17, 3
      %p155 = por %p153, %p154
      %p156 = scmp.ne.s32.totalorder %s145, %s146
      %p157 = scmp.eq.s32.totalorder %s17, 0
      %p158 = por %p156, %p157
      %p159 = scmp.ne.s32.totalorder %s145, %s146
      %p160 = scmp.eq.s32.totalorder %s18, 3
      %p161 = por %p159, %p160
      %p163 = scmp.ne.s32.totalorder %s146, %s162
      %p164 = scmp.eq.s32.totalorder %s18, 0
      %p165 = por %p163, %p164
      %p166 = scmp.le.s32.totalorder 1, %s12
      %p167 = scmp.lt.s32.totalorder %s12, 5
      %p168 = pnand %p166, %p167
      %p169 = pneg %p168
      // Predicated region
      $region9: #{unet_upconv_block.8} parent=5 // pred_check
        _
      $region10: #{unet_upconv_block.8} parent=5 // pred_check_branch
        %171 = sbr.rel (%p168) target = $region12
      $region11: #{unet_upconv_block.8} parent=5 // pred_region
        %s172 = ssub.s32 %s12, 1
        // Predicated region
        $region13: #{unet_upconv_block.8} parent=11 // pred_check
          %p173 = pneg %p59
        $region14: #{unet_upconv_block.8} parent=11 // pred_check_branch
          %175 = sbr.rel (%p173) target = $region16
        $region15: #{unet_upconv_block.8} parent=11 // pred_region
          _
        $region16: #{unet_upconv_block.8} parent=11 // pred_fallthru
          _
        // Predicated region
        $region17: #{unet_upconv_block.8} parent=11 // pred_check
          %p176 = pneg %p80
        $region18: #{unet_upconv_block.8} parent=11 // pred_check_branch
          %178 = sbr.rel (%p176) target = $region20
        $region19: #{unet_upconv_block.8} parent=11 // pred_region
          _
        $region20: #{unet_upconv_block.8} parent=11 // pred_fallthru
          _
      $region12: #{unet_upconv_block.8} parent=5 // pred_fallthru
        _
      %p179 = scmp.lt.s32.totalorder %s12, 4
      // Predicated region
      $region21: #{unet_upconv_block.8} parent=5 // pred_check
        %p180 = pneg %p179
      $region22: #{unet_upconv_block.8} parent=5 // pred_check_branch
        %182 = sbr.rel (%p180) target = $region24
      $region23: #{unet_upconv_block.8} parent=5 // pred_region
        // Predicated region
        $region25: #{unet_upconv_block.8} parent=23 // pred_check
          %p183 = pneg %p32
        $region26: #{unet_upconv_block.8} parent=23 // pred_check_branch
          %185 = sbr.rel (%p183) target = $region28
        $region27: #{unet_upconv_block.8} parent=23 // pred_region
          %s186 = sand.u32 %s22, 1
          %s187 = sand.u32 %s22, 1
          %s188 = smul.addr %s187, 784
          %s189 = scalar_lea.vmem [#allocation2], %s188
          %s190 = smul.u32 4, %s12
          %s191 = smul.addr %s190, 4
          %s192 = scalar_lea.vmem %s0, %s191
          // Predicated region
          $region29: #{unet_upconv_block.8} parent=27 // pred_check
            _
          $region30: #{unet_upconv_block.8} parent=27 // pred_check_branch
            %194 = sbr.rel (0) target = $region32
          $region31: #{unet_upconv_block.8} parent=27 // pred_region
            // Predicated region
            $region33: #{unet_upconv_block.8} parent=31 // pred_check
              _
            $region34: #{unet_upconv_block.8} parent=31 // pred_check_branch
              %196 = sbr.rel (0) target = $region36
            $region35: #{unet_upconv_block.8} parent=31 // pred_region
              loop: start=0, step=1, limit=1
              $region37: #{unet_upconv_block.8} parent=35 // loop_pre_header
                _
              $region38: #{unet_upconv_block.8} parent=35 // loop_header
                %s198 = sphi 0, %s202
                %p199 = scmp.ge.s32.totalorder %s198, 1
                %s203 = sphi %s192, %s192
                %s204 = sphi %s189, %s189
              $region39: #{unet_upconv_block.8} parent=35 // loop_header_branch
                %201 = sbr.rel (%p199) target = $region43
              $region40: #{unet_upconv_block.8} parent=35 // loop_body
                %v205 = vld [vmem:[%s203] sm:$0xff]
                %206 = vst [vmem:[%s204] sm:$0xff] %v205
                %v207 = vld [vmem:[%s203 + $0x8] sm:$0xff]
                %208 = vst [vmem:[%s204 + $0x8] sm:$0xff] %v207
                %v209 = vld [vmem:[%s203 + $0x40] sm:$0xff]
                %210 = vst [vmem:[%s204 + $0x10] sm:$0xff] %v209
                %v211 = vld [vmem:[%s203 + $0x48] sm:$0xff]
                %212 = vst [vmem:[%s204 + $0x18] sm:$0xff] %v211
                %v213 = vld [vmem:[%s203 + $0x80] sm:$0xff]
                %214 = vst [vmem:[%s204 + $0x20] sm:$0xff] %v213
                %v215 = vld [vmem:[%s203 + $0x88] sm:$0xff]
                %216 = vst [vmem:[%s204 + $0x28] sm:$0xff] %v215
                %v217 = vld [vmem:[%s203 + $0xc0] sm:$0xff]
                %218 = vst [vmem:[%s204 + $0x30] sm:$0xff] %v217
                %v219 = vld [vmem:[%s203 + $0xc8] sm:$0xff]
                %220 = vst [vmem:[%s204 + $0x38] sm:$0xff] %v219
                %v221 = vld [vmem:[%s203 + $0x100] sm:$0xff]
                %222 = vst [vmem:[%s204 + $0x40] sm:$0xff] %v221
                %v223 = vld [vmem:[%s203 + $0x108] sm:$0xff]
                %224 = vst [vmem:[%s204 + $0x48] sm:$0xff] %v223
                %v225 = vld [vmem:[%s203 + $0x140] sm:$0xff]
                %226 = vst [vmem:[%s204 + $0x50] sm:$0xff] %v225
                %v227 = vld [vmem:[%s203 + $0x148] sm:$0xff]
                %228 = vst [vmem:[%s204 + $0x58] sm:$0xff] %v227
                %v229 = vld [vmem:[%s203 + $0x180] sm:$0xff]
                %230 = vst [vmem:[%s204 + $0x60] sm:$0xff] %v229
                %v231 = vld [vmem:[%s203 + $0x188] sm:$0xff]
                %232 = vst [vmem:[%s204 + $0x68] sm:$0xff] %v231
                %v233 = vld [vmem:[%s203 + $0x1c0] sm:$0xff]
                %234 = vst [vmem:[%s204 + $0x70] sm:$0xff] %v233
                %v235 = vld [vmem:[%s203 + $0x1c8] sm:$0xff]
                %236 = vst [vmem:[%s204 + $0x78] sm:$0xff] %v235
                %v237 = vld [vmem:[%s203 + $0x200] sm:$0xff]
                %238 = vst [vmem:[%s204 + $0x80] sm:$0xff] %v237
                %v239 = vld [vmem:[%s203 + $0x208] sm:$0xff]
                %240 = vst [vmem:[%s204 + $0x88] sm:$0xff] %v239
                %v241 = vld [vmem:[%s203 + $0x240] sm:$0xff]
                %242 = vst [vmem:[%s204 + $0x90] sm:$0xff] %v241
                %v243 = vld [vmem:[%s203 + $0x248] sm:$0xff]
                %244 = vst [vmem:[%s204 + $0x98] sm:$0xff] %v243
                %v245 = vld [vmem:[%s203 + $0x280] sm:$0xff]
                %246 = vst [vmem:[%s204 + $0xa0] sm:$0xff] %v245
                %v247 = vld [vmem:[%s203 + $0x288] sm:$0xff]
                %248 = vst [vmem:[%s204 + $0xa8] sm:$0xff] %v247
                %v249 = vld [vmem:[%s203 + $0x2c0] sm:$0xff]
                %250 = vst [vmem:[%s204 + $0xb0] sm:$0xff] %v249
                %v251 = vld [vmem:[%s203 + $0x2c8] sm:$0xff]
                %252 = vst [vmem:[%s204 + $0xb8] sm:$0xff] %v251
                %v253 = vld [vmem:[%s203 + $0x300] sm:$0xff]
                %254 = vst [vmem:[%s204 + $0xc0] sm:$0xff] %v253
                %v255 = vld [vmem:[%s203 + $0x308] sm:$0xff]
                %256 = vst [vmem:[%s204 + $0xc8] sm:$0xff] %v255
                %v257 = vld [vmem:[%s203 + $0x340] sm:$0xff]
                %258 = vst [vmem:[%s204 + $0xd0] sm:$0xff] %v257
                %v259 = vld [vmem:[%s203 + $0x348] sm:$0xff]
                %260 = vst [vmem:[%s204 + $0xd8] sm:$0xff] %v259
                %v261 = vld [vmem:[%s203 + $0x380] sm:$0xff]
                %262 = vst [vmem:[%s204 + $0xe0] sm:$0xff] %v261
                %v263 = vld [vmem:[%s203 + $0x388] sm:$0xff]
                %264 = vst [vmem:[%s204 + $0xe8] sm:$0xff] %v263
                %v265 = vld [vmem:[%s203 + $0x3c0] sm:$0xff]
                %266 = vst [vmem:[%s204 + $0xf0] sm:$0xff] %v265
                %v267 = vld [vmem:[%s203 + $0x3c8] sm:$0xff]
                %268 = vst [vmem:[%s204 + $0xf8] sm:$0xff] %v267
                %v269 = vld [vmem:[%s203 + $0x400] sm:$0xff]
                %270 = vst [vmem:[%s204 + $0x100] sm:$0xff] %v269
                %v271 = vld [vmem:[%s203 + $0x408] sm:$0xff]
                %272 = vst [vmem:[%s204 + $0x108] sm:$0xff] %v271
                %v273 = vld [vmem:[%s203 + $0x440] sm:$0xff]
                %274 = vst [vmem:[%s204 + $0x110] sm:$0xff] %v273
                %v275 = vld [vmem:[%s203 + $0x448] sm:$0xff]
                %276 = vst [vmem:[%s204 + $0x118] sm:$0xff] %v275
                %v277 = vld [vmem:[%s203 + $0x480] sm:$0xff]
                %278 = vst [vmem:[%s204 + $0x120] sm:$0xff] %v277
                %v279 = vld [vmem:[%s203 + $0x488] sm:$0xff]
                %280 = vst [vmem:[%s204 + $0x128] sm:$0xff] %v279
                %v281 = vld [vmem:[%s203 + $0x4c0] sm:$0xff]
                %282 = vst [vmem:[%s204 + $0x130] sm:$0xff] %v281
                %v283 = vld [vmem:[%s203 + $0x4c8] sm:$0xff]
                %284 = vst [vmem:[%s204 + $0x138] sm:$0xff] %v283
                %v285 = vld [vmem:[%s203 + $0x500] sm:$0xff]
                %286 = vst [vmem:[%s204 + $0x140] sm:$0xff] %v285
                %v287 = vld [vmem:[%s203 + $0x508] sm:$0xff]
                %288 = vst [vmem:[%s204 + $0x148] sm:$0xff] %v287
                %v289 = vld [vmem:[%s203 + $0x540] sm:$0xff]
                %290 = vst [vmem:[%s204 + $0x150] sm:$0xff] %v289
                %v291 = vld [vmem:[%s203 + $0x548] sm:$0xff]
                %292 = vst [vmem:[%s204 + $0x158] sm:$0xff] %v291
                %v293 = vld [vmem:[%s203 + $0x580] sm:$0xff]
                %294 = vst [vmem:[%s204 + $0x160] sm:$0xff] %v293
                %v295 = vld [vmem:[%s203 + $0x588] sm:$0xff]
                %296 = vst [vmem:[%s204 + $0x168] sm:$0xff] %v295
                %v297 = vld [vmem:[%s203 + $0x5c0] sm:$0xff]
                %298 = vst [vmem:[%s204 + $0x170] sm:$0xff] %v297
                %v299 = vld [vmem:[%s203 + $0x5c8] sm:$0xff]
                %300 = vst [vmem:[%s204 + $0x178] sm:$0xff] %v299
                %v301 = vld [vmem:[%s203 + $0x600] sm:$0xff]
                %302 = vst [vmem:[%s204 + $0x180] sm:$0xff] %v301
                %v303 = vld [vmem:[%s203 + $0x608] sm:$0xff]
                %304 = vst [vmem:[%s204 + $0x188] sm:$0xff] %v303
                %v305 = vld [vmem:[%s203 + $0x640] sm:$0xff]
                %306 = vst [vmem:[%s204 + $0x190] sm:$0xff] %v305
                %v307 = vld [vmem:[%s203 + $0x648] sm:$0xff]
                %308 = vst [vmem:[%s204 + $0x198] sm:$0xff] %v307
                %v309 = vld [vmem:[%s203 + $0x680] sm:$0xff]
                %310 = vst [vmem:[%s204 + $0x1a0] sm:$0xff] %v309
                %v311 = vld [vmem:[%s203 + $0x688] sm:$0xff]
                %312 = vst [vmem:[%s204 + $0x1a8] sm:$0xff] %v311
                %v313 = vld [vmem:[%s203 + $0x6c0] sm:$0xff]
                %314 = vst [vmem:[%s204 + $0x1b0] sm:$0xff] %v313
                %v315 = vld [vmem:[%s203 + $0x6c8] sm:$0xff]
                %316 = vst [vmem:[%s204 + $0x1b8] sm:$0xff] %v315
                %v317 = vld [vmem:[%s203 + $0x700] sm:$0xff]
                %318 = vst [vmem:[%s204 + $0x1c0] sm:$0xff] %v317
                %v319 = vld [vmem:[%s203 + $0x708] sm:$0xff]
                %320 = vst [vmem:[%s204 + $0x1c8] sm:$0xff] %v319
                %v321 = vld [vmem:[%s203 + $0x740] sm:$0xff]
                %322 = vst [vmem:[%s204 + $0x1d0] sm:$0xff] %v321
                %v323 = vld [vmem:[%s203 + $0x748] sm:$0xff]
                %324 = vst [vmem:[%s204 + $0x1d8] sm:$0xff] %v323
                %v325 = vld [vmem:[%s203 + $0x780] sm:$0xff]
                %326 = vst [vmem:[%s204 + $0x1e0] sm:$0xff] %v325
                %v327 = vld [vmem:[%s203 + $0x788] sm:$0xff]
                %328 = vst [vmem:[%s204 + $0x1e8] sm:$0xff] %v327
                %v329 = vld [vmem:[%s203 + $0x7c0] sm:$0xff]
                %330 = vst [vmem:[%s204 + $0x1f0] sm:$0xff] %v329
                %v331 = vld [vmem:[%s203 + $0x7c8] sm:$0xff]
                %332 = vst [vmem:[%s204 + $0x1f8] sm:$0xff] %v331
                %v333 = vld [vmem:[%s203 + $0x800] sm:$0xff]
                %334 = vst [vmem:[%s204 + $0x200] sm:$0xff] %v333
                %v335 = vld [vmem:[%s203 + $0x808] sm:$0xff]
                %336 = vst [vmem:[%s204 + $0x208] sm:$0xff] %v335
                %v337 = vld [vmem:[%s203 + $0x840] sm:$0xff]
                %338 = vst [vmem:[%s204 + $0x210] sm:$0xff] %v337
                %v339 = vld [vmem:[%s203 + $0x848] sm:$0xff]
                %340 = vst [vmem:[%s204 + $0x218] sm:$0xff] %v339
                %v341 = vld [vmem:[%s203 + $0x880] sm:$0xff]
                %342 = vst [vmem:[%s204 + $0x220] sm:$0xff] %v341
                %v343 = vld [vmem:[%s203 + $0x888] sm:$0xff]
                %344 = vst [vmem:[%s204 + $0x228] sm:$0xff] %v343
                %v345 = vld [vmem:[%s203 + $0x8c0] sm:$0xff]
                %346 = vst [vmem:[%s204 + $0x230] sm:$0xff] %v345
                %v347 = vld [vmem:[%s203 + $0x8c8] sm:$0xff]
                %348 = vst [vmem:[%s204 + $0x238] sm:$0xff] %v347
                %v349 = vld [vmem:[%s203 + $0x900] sm:$0xff]
                %350 = vst [vmem:[%s204 + $0x240] sm:$0xff] %v349
                %v351 = vld [vmem:[%s203 + $0x908] sm:$0xff]
                %352 = vst [vmem:[%s204 + $0x248] sm:$0xff] %v351
                %v353 = vld [vmem:[%s203 + $0x940] sm:$0xff]
                %354 = vst [vmem:[%s204 + $0x250] sm:$0xff] %v353
                %v355 = vld [vmem:[%s203 + $0x948] sm:$0xff]
                %356 = vst [vmem:[%s204 + $0x258] sm:$0xff] %v355
                %v357 = vld [vmem:[%s203 + $0x980] sm:$0xff]
                %358 = vst [vmem:[%s204 + $0x260] sm:$0xff] %v357
                %v359 = vld [vmem:[%s203 + $0x988] sm:$0xff]
                %360 = vst [vmem:[%s204 + $0x268] sm:$0xff] %v359
                %v361 = vld [vmem:[%s203 + $0x9c0] sm:$0xff]
                %362 = vst [vmem:[%s204 + $0x270] sm:$0xff] %v361
                %v363 = vld [vmem:[%s203 + $0x9c8] sm:$0xff]
                %364 = vst [vmem:[%s204 + $0x278] sm:$0xff] %v363
                %v365 = vld [vmem:[%s203 + $0xa00] sm:$0xff]
                %366 = vst [vmem:[%s204 + $0x280] sm:$0xff] %v365
                %v367 = vld [vmem:[%s203 + $0xa08] sm:$0xff]
                %368 = vst [vmem:[%s204 + $0x288] sm:$0xff] %v367
                %v369 = vld [vmem:[%s203 + $0xa40] sm:$0xff]
                %370 = vst [vmem:[%s204 + $0x290] sm:$0xff] %v369
                %v371 = vld [vmem:[%s203 + $0xa48] sm:$0xff]
                %372 = vst [vmem:[%s204 + $0x298] sm:$0xff] %v371
                %v373 = vld [vmem:[%s203 + $0xa80] sm:$0xff]
                %374 = vst [vmem:[%s204 + $0x2a0] sm:$0xff] %v373
                %v375 = vld [vmem:[%s203 + $0xa88] sm:$0xff]
                %376 = vst [vmem:[%s204 + $0x2a8] sm:$0xff] %v375
                %v377 = vld [vmem:[%s203 + $0xac0] sm:$0xff]
                %378 = vst [vmem:[%s204 + $0x2b0] sm:$0xff] %v377
                %v379 = vld [vmem:[%s203 + $0xac8] sm:$0xff]
                %380 = vst [vmem:[%s204 + $0x2b8] sm:$0xff] %v379
                %v381 = vld [vmem:[%s203 + $0xb00] sm:$0xff]
                %382 = vst [vmem:[%s204 + $0x2c0] sm:$0xff] %v381
                %v383 = vld [vmem:[%s203 + $0xb08] sm:$0xff]
                %384 = vst [vmem:[%s204 + $0x2c8] sm:$0xff] %v383
                %v385 = vld [vmem:[%s203 + $0xb40] sm:$0xff]
                %386 = vst [vmem:[%s204 + $0x2d0] sm:$0xff] %v385
                %v387 = vld [vmem:[%s203 + $0xb48] sm:$0xff]
                %388 = vst [vmem:[%s204 + $0x2d8] sm:$0xff] %v387
                %v389 = vld [vmem:[%s203 + $0xb80] sm:$0xff]
                %390 = vst [vmem:[%s204 + $0x2e0] sm:$0xff] %v389
                %v391 = vld [vmem:[%s203 + $0xb88] sm:$0xff]
                %392 = vst [vmem:[%s204 + $0x2e8] sm:$0xff] %v391
                %v393 = vld [vmem:[%s203 + $0xbc0] sm:$0xff]
                %394 = vst [vmem:[%s204 + $0x2f0] sm:$0xff] %v393
                %v395 = vld [vmem:[%s203 + $0xbc8] sm:$0xff]
                %396 = vst [vmem:[%s204 + $0x2f8] sm:$0xff] %v395
                %v397 = vld [vmem:[%s203 + $0xc00] sm:$0xff]
                %398 = vst [vmem:[%s204 + $0x300] sm:$0xff] %v397
                %v399 = vld [vmem:[%s203 + $0xc08] sm:$0xff]
                %400 = vst [vmem:[%s204 + $0x308] sm:$0xff] %v399
              $region41: #{unet_upconv_block.8} parent=35 // loop_footer
                %s202 = sadd.s32 1, %s198
              $region42: #{unet_upconv_block.8} parent=35 // loop_footer_branch
                %197 = sbr.rel target = $region38
              $region43: #{unet_upconv_block.8} parent=35 // loop_exit
                _
            $region36: #{unet_upconv_block.8} parent=31 // pred_fallthru
              _
            // Predicated region
            $region44: #{unet_upconv_block.8} parent=31 // pred_check
              _
            $region45: #{unet_upconv_block.8} parent=31 // pred_check_branch
              %402 = sbr.rel target = $region47
            $region46: #{unet_upconv_block.8} parent=31 // pred_region
              _
            $region47: #{unet_upconv_block.8} parent=31 // pred_fallthru
              _
          $region32: #{unet_upconv_block.8} parent=27 // pred_fallthru
            _
          %403 = vnop
        $region28: #{unet_upconv_block.8} parent=23 // pred_fallthru
          _
      $region24: #{unet_upconv_block.8} parent=5 // pred_fallthru
        _
      %p404 = scmp.le.s32.totalorder 1, %s12
      %p405 = scmp.lt.s32.totalorder %s12, 5
      %p406 = pnand %p404, %p405
      %p407 = pneg %p406
      // Predicated region
      $region48: #{unet_upconv_block.8} parent=5 // pred_check
        _
      $region49: #{unet_upconv_block.8} parent=5 // pred_check_branch
        %409 = sbr.rel (%p406) target = $region51
      $region50: #{unet_upconv_block.8} parent=5 // pred_region
        %s410 = ssub.s32 %s12, 1
        %s411 = sand.u32 %s25, 1
        %s412 = sand.u32 %s25, 1
        %s413 = smul.addr %s412, 784
        %s414 = scalar_lea.vmem [#allocation2], %s413
        // Predicated region
        $region52: #{unet_upconv_block.8} parent=50 // pred_check
          %p415 = pneg %p38
        $region53: #{unet_upconv_block.8} parent=50 // pred_check_branch
          %417 = sbr.rel (%p415) target = $region55
        $region54: #{unet_upconv_block.8} parent=50 // pred_region
          _
        $region55: #{unet_upconv_block.8} parent=50 // pred_fallthru
          _
        %s418 = sand.u32 %s25, 1
        %s419 = sand.u32 %s25, 1
        %s420 = smul.addr %s419, 784
        %s421 = scalar_lea.vmem [#allocation2], %s420
        %p422 = pneg %p38
        %p423 = pneg %p35
        %p424 = pneg %p59
        %p425 = pneg %p56
        %p426 = pneg %p80
        %p427 = pneg %p77
        %p428 = pneg %p106
        %p429 = pneg %p103
        %s430 = smul.u32 4, %s17
        %p431 = scmp.lt.s32.totalorder %s430, 15
        %s432 = scalar_select %p431, %s430, 15
        %s433 = smul.addr %s432, 8
        %s434 = scalar_lea.vmem %s3, %s433
        %p435 = pneg %p132
        %p436 = pneg %p129
        %p437 = scmp.lt.s32.totalorder %s17, 3
        %s438 = scalar_select %p437, %s17, 3
        %s439 = smul.addr %s438, 8
        %s440 = scalar_lea.vmem %s4, %s439
        %p441 = pneg %p158
        %p442 = pneg %p155
        %p443 = scmp.lt.s32.totalorder %s17, 3
        %s444 = scalar_select %p443, %s17, 3
        %s445 = smul.addr %s444, 8
        %s446 = scalar_lea.vmem %s5, %s445
        %s447 = smul.u32 4, %s17
        %s448 = smul.u32 4, %s17
        %p449 = scmp.lt.s32.totalorder %s448, 15
        %s450 = scalar_select %p449, %s448, 15
        %s451 = smul.addr %s450, 8
        %s452 = scalar_lea.vmem %s3, %s451
        %s453 = smul.u32 4, %s17
        %p454 = scmp.lt.s32.totalorder %s17, 3
        %s455 = scalar_select %p454, %s17, 3
        %s456 = smul.addr %s455, 8
        %s457 = scalar_lea.vmem %s4, %s456
        %p458 = scmp.lt.s32.totalorder %s17, 3
        %s459 = scalar_select %p458, %s17, 3
        %s460 = smul.addr %s459, 8
        %s461 = scalar_lea.vmem %s5, %s460
        %v463 = vld [vmem:[%s1] sm:$0xff]
        %v464 = vld [vmem:[%s1 + $0x8] sm:$0xff]
        %v465 = vld [vmem:[%s414] sm:$0xff]
        %v466 = vld [vmem:[%s414 + $0x8] sm:$0xff]
        %v467 = vld [vmem:[%s414 + $0x10] sm:$0xff]
        %v468 = vld [vmem:[%s414 + $0x18] sm:$0xff]
        %v469 = vld [vmem:[%s414 + $0x20] sm:$0xff]
        %v470 = vld [vmem:[%s414 + $0x28] sm:$0xff]
        %v471 = vld [vmem:[%s414 + $0x30] sm:$0xff]
        %v472 = vld [vmem:[%s414 + $0x38] sm:$0xff]
        %v473 = vld [vmem:[%s414 + $0x40] sm:$0xff]
        %v474 = vld [vmem:[%s414 + $0x48] sm:$0xff]
        %v475 = vld [vmem:[%s414 + $0x50] sm:$0xff]
        %v476 = vld [vmem:[%s414 + $0x58] sm:$0xff]
        %v477 = vld [vmem:[%s414 + $0x60] sm:$0xff]
        %v478 = vld [vmem:[%s414 + $0x68] sm:$0xff]
        %v479 = vld [vmem:[%s414 + $0x70] sm:$0xff]
        %v480 = vld [vmem:[%s414 + $0x78] sm:$0xff]
        %v481 = vld [vmem:[%s414 + $0x80] sm:$0xff]
        %v482 = vld [vmem:[%s414 + $0x88] sm:$0xff]
        %v483 = vld [vmem:[%s414 + $0x90] sm:$0xff]
        %v484 = vld [vmem:[%s414 + $0x98] sm:$0xff]
        %v485 = vld [vmem:[%s414 + $0xa0] sm:$0xff]
        %v486 = vld [vmem:[%s414 + $0xa8] sm:$0xff]
        %v487 = vld [vmem:[%s414 + $0xb0] sm:$0xff]
        %v488 = vld [vmem:[%s414 + $0xb8] sm:$0xff]
        %v489 = vld [vmem:[%s414 + $0xc0] sm:$0xff]
        %v490 = vld [vmem:[%s414 + $0xc8] sm:$0xff]
        %v491 = vld [vmem:[%s414 + $0xd0] sm:$0xff]
        %v492 = vld [vmem:[%s414 + $0xd8] sm:$0xff]
        %v493 = vld [vmem:[%s414 + $0xe0] sm:$0xff]
        %v494 = vld [vmem:[%s414 + $0xe8] sm:$0xff]
        %v495 = vld [vmem:[%s414 + $0xf0] sm:$0xff]
        %v496 = vld [vmem:[%s414 + $0xf8] sm:$0xff]
        %v497 = vld [vmem:[%s414 + $0x100] sm:$0xff]
        %v498 = vld [vmem:[%s414 + $0x108] sm:$0xff]
        %v499 = vld [vmem:[%s414 + $0x110] sm:$0xff]
        %v500 = vld [vmem:[%s414 + $0x118] sm:$0xff]
        %v501 = vld [vmem:[%s414 + $0x120] sm:$0xff]
        %v502 = vld [vmem:[%s414 + $0x128] sm:$0xff]
        %v503 = vld [vmem:[%s414 + $0x130] sm:$0xff]
        %v504 = vld [vmem:[%s414 + $0x138] sm:$0xff]
        %v505 = vld [vmem:[%s414 + $0x140] sm:$0xff]
        %v506 = vld [vmem:[%s414 + $0x148] sm:$0xff]
        %v507 = vld [vmem:[%s414 + $0x150] sm:$0xff]
        %v508 = vld [vmem:[%s414 + $0x158] sm:$0xff]
        %v509 = vld [vmem:[%s414 + $0x160] sm:$0xff]
        %v510 = vld [vmem:[%s414 + $0x168] sm:$0xff]
        %v511 = vld [vmem:[%s414 + $0x170] sm:$0xff]
        %v512 = vld [vmem:[%s414 + $0x178] sm:$0xff]
        %v513 = vld [vmem:[%s414 + $0x180] sm:$0xff]
        %v514 = vld [vmem:[%s414 + $0x188] sm:$0xff]
        %v515 = vld [vmem:[%s414 + $0x190] sm:$0xff]
        %v516 = vld [vmem:[%s414 + $0x198] sm:$0xff]
        %v517 = vld [vmem:[%s414 + $0x1a0] sm:$0xff]
        %v518 = vld [vmem:[%s414 + $0x1a8] sm:$0xff]
        %v519 = vld [vmem:[%s414 + $0x1b0] sm:$0xff]
        %v520 = vld [vmem:[%s414 + $0x1b8] sm:$0xff]
        %v521 = vld [vmem:[%s414 + $0x1c0] sm:$0xff]
        %v522 = vld [vmem:[%s414 + $0x1c8] sm:$0xff]
        %v523 = vld [vmem:[%s414 + $0x1d0] sm:$0xff]
        %v524 = vld [vmem:[%s414 + $0x1d8] sm:$0xff]
        %v525 = vld [vmem:[%s414 + $0x1e0] sm:$0xff]
        %v526 = vld [vmem:[%s414 + $0x1e8] sm:$0xff]
        %v527 = vld [vmem:[%s414 + $0x1f0] sm:$0xff]
        %v528 = vld [vmem:[%s414 + $0x1f8] sm:$0xff]
        %v529 = vld [vmem:[%s414 + $0x200] sm:$0xff]
        %v530 = vld [vmem:[%s414 + $0x208] sm:$0xff]
        %v531 = vld [vmem:[%s414 + $0x210] sm:$0xff]
        %v532 = vld [vmem:[%s414 + $0x218] sm:$0xff]
        %v533 = vld [vmem:[%s414 + $0x220] sm:$0xff]
        %v534 = vld [vmem:[%s414 + $0x228] sm:$0xff]
        %v535 = vld [vmem:[%s414 + $0x230] sm:$0xff]
        %v536 = vld [vmem:[%s414 + $0x238] sm:$0xff]
        %v537 = vld [vmem:[%s414 + $0x240] sm:$0xff]
        %v538 = vld [vmem:[%s414 + $0x248] sm:$0xff]
        %v539 = vld [vmem:[%s414 + $0x250] sm:$0xff]
        %v540 = vld [vmem:[%s414 + $0x258] sm:$0xff]
        %v541 = vld [vmem:[%s414 + $0x260] sm:$0xff]
        %v542 = vld [vmem:[%s414 + $0x268] sm:$0xff]
        %v543 = vld [vmem:[%s414 + $0x270] sm:$0xff]
        %v544 = vld [vmem:[%s414 + $0x278] sm:$0xff]
        %v545 = vld [vmem:[%s414 + $0x280] sm:$0xff]
        %v546 = vld [vmem:[%s414 + $0x288] sm:$0xff]
        %v547 = vld [vmem:[%s414 + $0x290] sm:$0xff]
        %v548 = vld [vmem:[%s414 + $0x298] sm:$0xff]
        %v549 = vld [vmem:[%s414 + $0x2a0] sm:$0xff]
        %v550 = vld [vmem:[%s414 + $0x2a8] sm:$0xff]
        %v551 = vld [vmem:[%s414 + $0x2b0] sm:$0xff]
        %v552 = vld [vmem:[%s414 + $0x2b8] sm:$0xff]
        %v553 = vld [vmem:[%s414 + $0x2c0] sm:$0xff]
        %v554 = vld [vmem:[%s414 + $0x2c8] sm:$0xff]
        %v555 = vld [vmem:[%s414 + $0x2d0] sm:$0xff]
        %v556 = vld [vmem:[%s414 + $0x2d8] sm:$0xff]
        %v557 = vld [vmem:[%s414 + $0x2e0] sm:$0xff]
        %v558 = vld [vmem:[%s414 + $0x2e8] sm:$0xff]
        %v559 = vld [vmem:[%s414 + $0x2f0] sm:$0xff]
        %v560 = vld [vmem:[%s414 + $0x2f8] sm:$0xff]
        %v561 = vld [vmem:[%s414 + $0x300] sm:$0xff]
        %v562 = vld [vmem:[%s414 + $0x308] sm:$0xff]
        %v563 = vld [vmem:[%s2] sm:$0xff]
        %565 = vset.pattern.permute.xlu0 0
        %566 = vperm.xlu0 %565, %v563
        %v567 = vpop.permute.xlu0 %566
        %v571 = vunpack.c.l.b16 %v463
        %v572 = vunpack.c.h.b16 %v463
        %v573 = vunpack.c.l.b16 %v464
        %v574 = vunpack.c.h.b16 %v464
        %v575 = vpack.c.b16 %v571, %v571
        %v576 = vpack.c.b16 %v572, %v572
        %v577 = vpack.c.b16 %v573, %v573
        %v578 = vpack.c.b16 %v574, %v574
        %v680 = vunpack.c.l.b16 %v465
        %v681 = vunpack.c.h.b16 %v465
        %v682 = vunpack.c.l.b16 %v466
        %v683 = vunpack.c.h.b16 %v466
        %v684 = vunpack.c.l.b16 %v467
        %v685 = vunpack.c.h.b16 %v467
        %v686 = vunpack.c.l.b16 %v468
        %v687 = vunpack.c.h.b16 %v468
        %v688 = vunpack.c.l.b16 %v469
        %v689 = vunpack.c.h.b16 %v469
        %v690 = vunpack.c.l.b16 %v470
        %v691 = vunpack.c.h.b16 %v470
        %v692 = vunpack.c.l.b16 %v471
        %v693 = vunpack.c.h.b16 %v471
        %v694 = vunpack.c.l.b16 %v472
        %v695 = vunpack.c.h.b16 %v472
        %v696 = vunpack.c.l.b16 %v473
        %v697 = vunpack.c.h.b16 %v473
        %v698 = vunpack.c.l.b16 %v474
        %v699 = vunpack.c.h.b16 %v474
        %v700 = vunpack.c.l.b16 %v475
        %v701 = vunpack.c.h.b16 %v475
        %v702 = vunpack.c.l.b16 %v476
        %v703 = vunpack.c.h.b16 %v476
        %v704 = vunpack.c.l.b16 %v477
        %v705 = vunpack.c.h.b16 %v477
        %v706 = vunpack.c.l.b16 %v478
        %v707 = vunpack.c.h.b16 %v478
        %v708 = vunpack.c.l.b16 %v479
        %v709 = vunpack.c.h.b16 %v479
        %v710 = vunpack.c.l.b16 %v480
        %v711 = vunpack.c.h.b16 %v480
        %v712 = vunpack.c.l.b16 %v481
        %v713 = vunpack.c.h.b16 %v481
        %v714 = vunpack.c.l.b16 %v482
        %v715 = vunpack.c.h.b16 %v482
        %v716 = vunpack.c.l.b16 %v483
        %v717 = vunpack.c.h.b16 %v483
        %v718 = vunpack.c.l.b16 %v484
        %v719 = vunpack.c.h.b16 %v484
        %v720 = vunpack.c.l.b16 %v485
        %v721 = vunpack.c.h.b16 %v485
        %v722 = vunpack.c.l.b16 %v486
        %v723 = vunpack.c.h.b16 %v486
        %v724 = vunpack.c.l.b16 %v487
        %v725 = vunpack.c.h.b16 %v487
        %v726 = vunpack.c.l.b16 %v488
        %v727 = vunpack.c.h.b16 %v488
        %v728 = vunpack.c.l.b16 %v489
        %v729 = vunpack.c.h.b16 %v489
        %v730 = vunpack.c.l.b16 %v490
        %v731 = vunpack.c.h.b16 %v490
        %v732 = vunpack.c.l.b16 %v491
        %v733 = vunpack.c.h.b16 %v491
        %v734 = vunpack.c.l.b16 %v492
        %v735 = vunpack.c.h.b16 %v492
        %v736 = vunpack.c.l.b16 %v493
        %v737 = vunpack.c.h.b16 %v493
        %v738 = vunpack.c.l.b16 %v494
        %v739 = vunpack.c.h.b16 %v494
        %v740 = vunpack.c.l.b16 %v495
        %v741 = vunpack.c.h.b16 %v495
        %v742 = vunpack.c.l.b16 %v496
        %v743 = vunpack.c.h.b16 %v496
        %v744 = vunpack.c.l.b16 %v497
        %v745 = vunpack.c.h.b16 %v497
        %v746 = vunpack.c.l.b16 %v498
        %v747 = vunpack.c.h.b16 %v498
        %v748 = vunpack.c.l.b16 %v499
        %v749 = vunpack.c.h.b16 %v499
        %v750 = vunpack.c.l.b16 %v500
        %v751 = vunpack.c.h.b16 %v500
        %v752 = vunpack.c.l.b16 %v501
        %v753 = vunpack.c.h.b16 %v501
        %v754 = vunpack.c.l.b16 %v502
        %v755 = vunpack.c.h.b16 %v502
        %v756 = vunpack.c.l.b16 %v503
        %v757 = vunpack.c.h.b16 %v503
        %v758 = vunpack.c.l.b16 %v504
        %v759 = vunpack.c.h.b16 %v504
        %v760 = vunpack.c.l.b16 %v505
        %v761 = vunpack.c.h.b16 %v505
        %v762 = vunpack.c.l.b16 %v506
        %v763 = vunpack.c.h.b16 %v506
        %v764 = vunpack.c.l.b16 %v507
        %v765 = vunpack.c.h.b16 %v507
        %v766 = vunpack.c.l.b16 %v508
        %v767 = vunpack.c.h.b16 %v508
        %v768 = vunpack.c.l.b16 %v509
        %v769 = vunpack.c.h.b16 %v509
        %v770 = vunpack.c.l.b16 %v510
        %v771 = vunpack.c.h.b16 %v510
        %v772 = vunpack.c.l.b16 %v511
        %v773 = vunpack.c.h.b16 %v511
        %v774 = vunpack.c.l.b16 %v512
        %v775 = vunpack.c.h.b16 %v512
        %v776 = vunpack.c.l.b16 %v513
        %v777 = vunpack.c.h.b16 %v513
        %v778 = vunpack.c.l.b16 %v514
        %v779 = vunpack.c.h.b16 %v514
        %v780 = vunpack.c.l.b16 %v515
        %v781 = vunpack.c.h.b16 %v515
        %v782 = vunpack.c.l.b16 %v516
        %v783 = vunpack.c.h.b16 %v516
        %v784 = vunpack.c.l.b16 %v517
        %v785 = vunpack.c.h.b16 %v517
        %v786 = vunpack.c.l.b16 %v518
        %v787 = vunpack.c.h.b16 %v518
        %v788 = vunpack.c.l.b16 %v519
        %v789 = vunpack.c.h.b16 %v519
        %v790 = vunpack.c.l.b16 %v520
        %v791 = vunpack.c.h.b16 %v520
        %v792 = vunpack.c.l.b16 %v521
        %v793 = vunpack.c.h.b16 %v521
        %v794 = vunpack.c.l.b16 %v522
        %v795 = vunpack.c.h.b16 %v522
        %v796 = vunpack.c.l.b16 %v523
        %v797 = vunpack.c.h.b16 %v523
        %v798 = vunpack.c.l.b16 %v524
        %v799 = vunpack.c.h.b16 %v524
        %v800 = vunpack.c.l.b16 %v525
        %v801 = vunpack.c.h.b16 %v525
        %v802 = vunpack.c.l.b16 %v526
        %v803 = vunpack.c.h.b16 %v526
        %v804 = vunpack.c.l.b16 %v527
        %v805 = vunpack.c.h.b16 %v527
        %v806 = vunpack.c.l.b16 %v528
        %v807 = vunpack.c.h.b16 %v528
        %v808 = vunpack.c.l.b16 %v529
        %v809 = vunpack.c.h.b16 %v529
        %v810 = vunpack.c.l.b16 %v530
        %v811 = vunpack.c.h.b16 %v530
        %v812 = vunpack.c.l.b16 %v531
        %v813 = vunpack.c.h.b16 %v531
        %v814 = vunpack.c.l.b16 %v532
        %v815 = vunpack.c.h.b16 %v532
        %v816 = vunpack.c.l.b16 %v533
        %v817 = vunpack.c.h.b16 %v533
        %v818 = vunpack.c.l.b16 %v534
        %v819 = vunpack.c.h.b16 %v534
        %v820 = vunpack.c.l.b16 %v535
        %v821 = vunpack.c.h.b16 %v535
        %v822 = vunpack.c.l.b16 %v536
        %v823 = vunpack.c.h.b16 %v536
        %v824 = vunpack.c.l.b16 %v537
        %v825 = vunpack.c.h.b16 %v537
        %v826 = vunpack.c.l.b16 %v538
        %v827 = vunpack.c.h.b16 %v538
        %v828 = vunpack.c.l.b16 %v539
        %v829 = vunpack.c.h.b16 %v539
        %v830 = vunpack.c.l.b16 %v540
        %v831 = vunpack.c.h.b16 %v540
        %v832 = vunpack.c.l.b16 %v541
        %v833 = vunpack.c.h.b16 %v541
        %v834 = vunpack.c.l.b16 %v542
        %v835 = vunpack.c.h.b16 %v542
        %v836 = vunpack.c.l.b16 %v543
        %v837 = vunpack.c.h.b16 %v543
        %v838 = vunpack.c.l.b16 %v544
        %v839 = vunpack.c.h.b16 %v544
        %v840 = vunpack.c.l.b16 %v545
        %v841 = vunpack.c.h.b16 %v545
        %v842 = vunpack.c.l.b16 %v546
        %v843 = vunpack.c.h.b16 %v546
        %v844 = vunpack.c.l.b16 %v547
        %v845 = vunpack.c.h.b16 %v547
        %v846 = vunpack.c.l.b16 %v548
        %v847 = vunpack.c.h.b16 %v548
        %v848 = vunpack.c.l.b16 %v549
        %v849 = vunpack.c.h.b16 %v549
        %v850 = vunpack.c.l.b16 %v550
        %v851 = vunpack.c.h.b16 %v550
        %v852 = vunpack.c.l.b16 %v551
        %v853 = vunpack.c.h.b16 %v551
        %v854 = vunpack.c.l.b16 %v552
        %v855 = vunpack.c.h.b16 %v552
        %v856 = vunpack.c.l.b16 %v553
        %v857 = vunpack.c.h.b16 %v553
        %v858 = vunpack.c.l.b16 %v554
        %v859 = vunpack.c.h.b16 %v554
        %v860 = vunpack.c.l.b16 %v555
        %v861 = vunpack.c.h.b16 %v555
        %v862 = vunpack.c.l.b16 %v556
        %v863 = vunpack.c.h.b16 %v556
        %v864 = vunpack.c.l.b16 %v557
        %v865 = vunpack.c.h.b16 %v557
        %v866 = vunpack.c.l.b16 %v558
        %v867 = vunpack.c.h.b16 %v558
        %v868 = vunpack.c.l.b16 %v559
        %v869 = vunpack.c.h.b16 %v559
        %v870 = vunpack.c.l.b16 %v560
        %v871 = vunpack.c.h.b16 %v560
        %v872 = vunpack.c.l.b16 %v561
        %v873 = vunpack.c.h.b16 %v561
        %v874 = vunpack.c.l.b16 %v562
        %v875 = vunpack.c.h.b16 %v562
        %v876 = vpack.c.b16 %v684, %v680
        %v877 = vpack.c.b16 %v685, %v681
        %v878 = vpack.c.b16 %v686, %v682
        %v879 = vpack.c.b16 %v687, %v683
        %v880 = vpack.c.b16 %v692, %v688
        %v881 = vpack.c.b16 %v693, %v689
        %v882 = vpack.c.b16 %v694, %v690
        %v883 = vpack.c.b16 %v695, %v691
        %v884 = vpack.c.b16 %v700, %v696
        %v885 = vpack.c.b16 %v701, %v697
        %v886 = vpack.c.b16 %v702, %v698
        %v887 = vpack.c.b16 %v703, %v699
        %v888 = vpack.c.b16 %v708, %v704
        %v889 = vpack.c.b16 %v709, %v705
        %v890 = vpack.c.b16 %v710, %v706
        %v891 = vpack.c.b16 %v711, %v707
        %v892 = vpack.c.b16 %v716, %v712
        %v893 = vpack.c.b16 %v717, %v713
        %v894 = vpack.c.b16 %v718, %v714
        %v895 = vpack.c.b16 %v719, %v715
        %v896 = vpack.c.b16 %v724, %v720
        %v897 = vpack.c.b16 %v725, %v721
        %v898 = vpack.c.b16 %v726, %v722
        %v899 = vpack.c.b16 %v727, %v723
        %v900 = vpack.c.b16 %v732, %v728
        %v901 = vpack.c.b16 %v733, %v729
        %v902 = vpack.c.b16 %v734, %v730
        %v903 = vpack.c.b16 %v735, %v731
        %v904 = vpack.c.b16 %v740, %v736
        %v905 = vpack.c.b16 %v741, %v737
        %v906 = vpack.c.b16 %v742, %v738
        %v907 = vpack.c.b16 %v743, %v739
        %v908 = vpack.c.b16 %v748, %v744
        %v909 = vpack.c.b16 %v749, %v745
        %v910 = vpack.c.b16 %v750, %v746
        %v911 = vpack.c.b16 %v751, %v747
        %v912 = vpack.c.b16 %v756, %v752
        %v913 = vpack.c.b16 %v757, %v753
        %v914 = vpack.c.b16 %v758, %v754
        %v915 = vpack.c.b16 %v759, %v755
        %v916 = vpack.c.b16 %v764, %v760
        %v917 = vpack.c.b16 %v765, %v761
        %v918 = vpack.c.b16 %v766, %v762
        %v919 = vpack.c.b16 %v767, %v763
        %v920 = vpack.c.b16 %v772, %v768
        %v921 = vpack.c.b16 %v773, %v769
        %v922 = vpack.c.b16 %v774, %v770
        %v923 = vpack.c.b16 %v775, %v771
        %v924 = vpack.c.b16 %v780, %v776
        %v925 = vpack.c.b16 %v781, %v777
        %v926 = vpack.c.b16 %v782, %v778
        %v927 = vpack.c.b16 %v783, %v779
        %v928 = vpack.c.b16 %v788, %v784
        %v929 = vpack.c.b16 %v789, %v785
        %v930 = vpack.c.b16 %v790, %v786
        %v931 = vpack.c.b16 %v791, %v787
        %v932 = vpack.c.b16 %v796, %v792
        %v933 = vpack.c.b16 %v797, %v793
        %v934 = vpack.c.b16 %v798, %v794
        %v935 = vpack.c.b16 %v799, %v795
        %v936 = vpack.c.b16 %v804, %v800
        %v937 = vpack.c.b16 %v805, %v801
        %v938 = vpack.c.b16 %v806, %v802
        %v939 = vpack.c.b16 %v807, %v803
        %v940 = vpack.c.b16 %v812, %v808
        %v941 = vpack.c.b16 %v813, %v809
        %v942 = vpack.c.b16 %v814, %v810
        %v943 = vpack.c.b16 %v815, %v811
        %v944 = vpack.c.b16 %v820, %v816
        %v945 = vpack.c.b16 %v821, %v817
        %v946 = vpack.c.b16 %v822, %v818
        %v947 = vpack.c.b16 %v823, %v819
        %v948 = vpack.c.b16 %v828, %v824
        %v949 = vpack.c.b16 %v829, %v825
        %v950 = vpack.c.b16 %v830, %v826
        %v951 = vpack.c.b16 %v831, %v827
        %v952 = vpack.c.b16 %v836, %v832
        %v953 = vpack.c.b16 %v837, %v833
        %v954 = vpack.c.b16 %v838, %v834
        %v955 = vpack.c.b16 %v839, %v835
        %v956 = vpack.c.b16 %v844, %v840
        %v957 = vpack.c.b16 %v845, %v841
        %v958 = vpack.c.b16 %v846, %v842
        %v959 = vpack.c.b16 %v847, %v843
        %v960 = vpack.c.b16 %v852, %v848
        %v961 = vpack.c.b16 %v853, %v849
        %v962 = vpack.c.b16 %v854, %v850
        %v963 = vpack.c.b16 %v855, %v851
        %v964 = vpack.c.b16 %v860, %v856
        %v965 = vpack.c.b16 %v861, %v857
        %v966 = vpack.c.b16 %v862, %v858
        %v967 = vpack.c.b16 %v863, %v859
        %v968 = vpack.c.b16 %v868, %v864
        %v969 = vpack.c.b16 %v869, %v865
        %v970 = vpack.c.b16 %v870, %v866
        %v971 = vpack.c.b16 %v871, %v867
        %v972 = vpack.c.b16 %v872, %v872
        %v973 = vpack.c.b16 %v873, %v873
        %v974 = vpack.c.b16 %v874, %v874
        %v975 = vpack.c.b16 %v875, %v875
        %vm1072 = vcmask 64512
        %v1074 = vsel %vm1072, %v578, 0
        %vm1076 = vcmask 1043456
        %v1078 = vsel %vm1076, %v972, 0
        %v1081 = vsel %vm1076, %v973, 0
        %v1084 = vsel %vm1076, %v974, 0
        %v1087 = vsel %vm1076, %v975, 0
        %1089 = vmatprep.subr.bf16.mxu0 %v877
        %1090 = vmatpush1.bf16.msra.mxu0 %v876
        %1091 = vmatprep.subr.bf16.mxu0 %v881
        %1092 = vmatpush1.bf16.msra.mxu0 %v880
        %1093 = vmatprep.subr.bf16.mxu0 %v885
        %1094 = vmatpush1.bf16.msra.mxu0 %v884
        %1095 = vmatprep.subr.bf16.mxu0 %v889
        %1096 = vmatpush1.bf16.msra.mxu0 %v888
        %1097 = vmatprep.subr.bf16.mxu0 %v893
        %1098 = vmatpush1.bf16.msra.mxu0 %v892
        %1099 = vmatprep.subr.bf16.mxu0 %v897
        %1100 = vmatpush1.bf16.msra.mxu0 %v896
        %1101 = vmatprep.subr.bf16.mxu0 %v901
        %1102 = vmatpush1.bf16.msra.mxu0 %v900
        %1103 = vmatprep.subr.bf16.mxu0 %v905
        %1104 = vmatpush1.bf16.msra.mxu0 %v904
        %1105 = vmatprep.subr.bf16.mxu0 %v909
        %1106 = vmatpush1.bf16.msra.mxu0 %v908
        %1107 = vmatprep.subr.bf16.mxu0 %v913
        %1108 = vmatpush1.bf16.msra.mxu0 %v912
        %1109 = vmatprep.subr.bf16.mxu0 %v917
        %1110 = vmatpush1.bf16.msra.mxu0 %v916
        %1111 = vmatprep.subr.bf16.mxu0 %v921
        %1112 = vmatpush1.bf16.msra.mxu0 %v920
        %1113 = vmatprep.subr.bf16.mxu0 %v925
        %1114 = vmatpush1.bf16.msra.mxu0 %v924
        %1115 = vmatprep.subr.bf16.mxu0 %v929
        %1116 = vmatpush1.bf16.msra.mxu0 %v928
        %1117 = vmatprep.subr.bf16.mxu0 %v933
        %1118 = vmatpush1.bf16.msra.mxu0 %v932
        %1119 = vmatprep.subr.bf16.mxu0 %v937
        %1120 = vmatpush1.bf16.msra.mxu0 %v936
        %1121 = vmatprep.mubr.bf16.mxu0 %v576
        %1122 = vmatmul.mubr.bf16.gmra.mrb[0].mxu0 %v575
        %v1123 = vpop.f32.mrb[0].mxu0
        %v1124 = vadd.f32 %v567, %v1123
        %v1125 = vpop.f32.mrb[0].mxu0
        %v1126 = vadd.f32 %v567, %v1125
        %v1127 = vpop.f32.mrb[0].mxu0
        %v1128 = vpop.f32.mrb[0].mxu0
        %1129 = vdwg.mxu0
        %1130 = vmatprep.subr.bf16.mxu0 %v941
        %1131 = vmatpush1.bf16.msra.mxu0 %v940
        %1132 = vmatprep.subr.bf16.mxu0 %v945
        %1133 = vmatpush1.bf16.msra.mxu0 %v944
        %1134 = vmatprep.subr.bf16.mxu0 %v949
        %1135 = vmatpush1.bf16.msra.mxu0 %v948
        %1136 = vmatprep.subr.bf16.mxu0 %v953
        %1137 = vmatpush1.bf16.msra.mxu0 %v952
        %1138 = vmatprep.subr.bf16.mxu0 %v957
        %1139 = vmatpush1.bf16.msra.mxu0 %v956
        %1140 = vmatprep.subr.bf16.mxu0 %v961
        %1141 = vmatpush1.bf16.msra.mxu0 %v960
        %1142 = vmatprep.subr.bf16.mxu0 %v965
        %1143 = vmatpush1.bf16.msra.mxu0 %v964
        %1144 = vmatprep.subr.bf16.mxu0 %v969
        %1145 = vmatpush1.bf16.msra.mxu0 %v968
        %1146 = vmatprep.subr.bf16.mxu0 %v1081
        %1147 = vmatpush1.bf16.msra.mxu0 %v1078
        %1148 = vmatprep.subr.bf16.mxu0 0
        %1149 = vmatpush1.bf16.msra.mxu0 0
        %1150 = vmatprep.subr.bf16.mxu0 0
        %1151 = vmatpush1.bf16.msra.mxu0 0
        %1152 = vmatprep.subr.bf16.mxu0 0
        %1153 = vmatpush1.bf16.msra.mxu0 0
        %1154 = vmatprep.subr.bf16.mxu0 0
        %1155 = vmatpush1.bf16.msra.mxu0 0
        %1156 = vmatprep.subr.bf16.mxu0 0
        %1157 = vmatpush1.bf16.msra.mxu0 0
        %1158 = vmatprep.subr.bf16.mxu0 0
        %1159 = vmatpush1.bf16.msra.mxu0 0
        %1160 = vmatprep.subr.bf16.mxu0 0
        %1161 = vmatpush1.bf16.msra.mxu0 0
        %1162 = vmatprep.mubr.bf16.mxu0 %v1074
        %1163 = vmatmul.mubr.bf16.gmra.mrb[0].mxu0 %v577
        %v1164 = vpop.f32.mrb[0].mxu0
        %v1165 = vadd.f32 %v1124, %v1164
        %v1166 = vpop.f32.mrb[0].mxu0
        %v1167 = vadd.f32 %v1126, %v1166
        %v1168 = vpop.f32.mrb[0].mxu0
        %v1169 = vpop.f32.mrb[0].mxu0
        %1170 = vdwg.mxu0
        %1171 = vmatprep.subr.bf16.mxu0 %v879
        %1172 = vmatpush1.bf16.msra.mxu0 %v878
        %1173 = vmatprep.subr.bf16.mxu0 %v883
        %1174 = vmatpush1.bf16.msra.mxu0 %v882
        %1175 = vmatprep.subr.bf16.mxu0 %v887
        %1176 = vmatpush1.bf16.msra.mxu0 %v886
        %1177 = vmatprep.subr.bf16.mxu0 %v891
        %1178 = vmatpush1.bf16.msra.mxu0 %v890
        %1179 = vmatprep.subr.bf16.mxu0 %v895
        %1180 = vmatpush1.bf16.msra.mxu0 %v894
        %1181 = vmatprep.subr.bf16.mxu0 %v899
        %1182 = vmatpush1.bf16.msra.mxu0 %v898
        %1183 = vmatprep.subr.bf16.mxu0 %v903
        %1184 = vmatpush1.bf16.msra.mxu0 %v902
        %1185 = vmatprep.subr.bf16.mxu0 %v907
        %1186 = vmatpush1.bf16.msra.mxu0 %v906
        %1187 = vmatprep.subr.bf16.mxu0 %v911
        %1188 = vmatpush1.bf16.msra.mxu0 %v910
        %1189 = vmatprep.subr.bf16.mxu0 %v915
        %1190 = vmatpush1.bf16.msra.mxu0 %v914
        %1191 = vmatprep.subr.bf16.mxu0 %v919
        %1192 = vmatpush1.bf16.msra.mxu0 %v918
        %1193 = vmatprep.subr.bf16.mxu0 %v923
        %1194 = vmatpush1.bf16.msra.mxu0 %v922
        %1195 = vmatprep.subr.bf16.mxu0 %v927
        %1196 = vmatpush1.bf16.msra.mxu0 %v926
        %1197 = vmatprep.subr.bf16.mxu0 %v931
        %1198 = vmatpush1.bf16.msra.mxu0 %v930
        %1199 = vmatprep.subr.bf16.mxu0 %v935
        %1200 = vmatpush1.bf16.msra.mxu0 %v934
        %1201 = vmatprep.subr.bf16.mxu0 %v939
        %1202 = vmatpush1.bf16.msra.mxu0 %v938
        %1203 = vmatprep.mubr.bf16.mxu0 %v576
        %1204 = vmatmul.mubr.bf16.gmra.mrb[0].mxu0 %v575
        %v1205 = vpop.f32.mrb[0].mxu0
        %v1206 = vadd.f32 %v567, %v1205
        %v1207 = vpop.f32.mrb[0].mxu0
        %v1208 = vadd.f32 %v567, %v1207
        %v1209 = vpop.f32.mrb[0].mxu0
        %v1210 = vpop.f32.mrb[0].mxu0
        %1211 = vdwg.mxu0
        %1212 = vmatprep.subr.bf16.mxu0 %v943
        %1213 = vmatpush1.bf16.msra.mxu0 %v942
        %1214 = vmatprep.subr.bf16.mxu0 %v947
        %1215 = vmatpush1.bf16.msra.mxu0 %v946
        %1216 = vmatprep.subr.bf16.mxu0 %v951
        %1217 = vmatpush1.bf16.msra.mxu0 %v950
        %1218 = vmatprep.subr.bf16.mxu0 %v955
        %1219 = vmatpush1.bf16.msra.mxu0 %v954
        %1220 = vmatprep.subr.bf16.mxu0 %v959
        %1221 = vmatpush1.bf16.msra.mxu0 %v958
        %1222 = vmatprep.subr.bf16.mxu0 %v963
        %1223 = vmatpush1.bf16.msra.mxu0 %v962
        %1224 = vmatprep.subr.bf16.mxu0 %v967
        %1225 = vmatpush1.bf16.msra.mxu0 %v966
        %1226 = vmatprep.subr.bf16.mxu0 %v971
        %1227 = vmatpush1.bf16.msra.mxu0 %v970
        %1228 = vmatprep.subr.bf16.mxu0 %v1087
        %1229 = vmatpush1.bf16.msra.mxu0 %v1084
        %1230 = vmatprep.subr.bf16.mxu0 0
        %1231 = vmatpush1.bf16.msra.mxu0 0
        %1232 = vmatprep.subr.bf16.mxu0 0
        %1233 = vmatpush1.bf16.msra.mxu0 0
        %1234 = vmatprep.subr.bf16.mxu0 0
        %1235 = vmatpush1.bf16.msra.mxu0 0
        %1236 = vmatprep.subr.bf16.mxu0 0
        %1237 = vmatpush1.bf16.msra.mxu0 0
        %1238 = vmatprep.subr.bf16.mxu0 0
        %1239 = vmatpush1.bf16.msra.mxu0 0
        %1240 = vmatprep.subr.bf16.mxu0 0
        %1241 = vmatpush1.bf16.msra.mxu0 0
        %1242 = vmatprep.subr.bf16.mxu0 0
        %1243 = vmatpush1.bf16.msra.mxu0 0
        %1244 = vmatprep.mubr.bf16.mxu0 %v1074
        %1245 = vmatmul.mubr.bf16.gmra.mrb[0].mxu0 %v577
        %v1246 = vpop.f32.mrb[0].mxu0
        %v1247 = vadd.f32 %v1206, %v1246
        %v1248 = vpop.f32.mrb[0].mxu0
        %v1249 = vadd.f32 %v1208, %v1248
        %v1250 = vpop.f32.mrb[0].mxu0
        %v1251 = vpop.f32.mrb[0].mxu0
        %1252 = vdwg.mxu0
        %v1253 = vmax.f32 %v1165, 0.0
        %v1254 = vmax.f32 %v1167, 0.0
        %v1255 = vmax.f32 %v1247, 0.0
        %v1256 = vmax.f32 %v1249, 0.0
        %1257 = vst [vmem:[%s452] sm:$0xff] %v1253
        %1258 = vst [vmem:[%s452 + $0x8] sm:$0xff] %v1254
        %1259 = vst [vmem:[%s452 + $0x10] sm:$0xff] %v1255
        %1260 = vst [vmem:[%s452 + $0x18] sm:$0xff] %v1256
        %v1261 = vadd.f32 %v1253, %v1254
        %v1262 = vadd.f32 %v1261, %v1255
        %v1263 = vadd.f32 %v1262, %v1256
        %1264 = vadd.xlane.f32.xlu0 %v1263
        %v1265 = vpop.xlane.xlu0 %1264
        %vm1266 = vcmask 7168
        %1267 = vst.msk [vmem:[%s457] sm:$0xff] %vm1266, %v1265
        %v1268 = vmul.f32 %v1253, %v1253
        %v1269 = vmul.f32 %v1254, %v1254
        %v1270 = vmul.f32 %v1255, %v1255
        %v1271 = vmul.f32 %v1256, %v1256
        %v1272 = vadd.f32 %v1268, %v1269
        %v1273 = vadd.f32 %v1272, %v1270
        %v1274 = vadd.f32 %v1273, %v1271
        %1275 = vadd.xlane.f32.xlu0 %v1274
        %v1276 = vpop.xlane.xlu0 %1275
        %1277 = vst.msk [vmem:[%s461] sm:$0xff] %vm1266, %v1276
        %s1278 = smul.u32 4, %s17
        %p1279 = scmp.lt.s32.totalorder %s1278, 15
        %s1280 = scalar_select %p1279, %s1278, 15
        %s1281 = smul.addr %s1280, 8
        %s1282 = scalar_lea.vmem %s3, %s1281
        %p1283 = scmp.lt.s32.totalorder %s17, 3
        %s1284 = scalar_select %p1283, %s17, 3
        %s1285 = smul.addr %s1284, 8
        %s1286 = scalar_lea.vmem %s4, %s1285
        %p1287 = scmp.lt.s32.totalorder %s17, 3
        %s1288 = scalar_select %p1287, %s17, 3
        %s1289 = smul.addr %s1288, 8
        %s1290 = scalar_lea.vmem %s5, %s1289
        // Predicated region
        $region56: #{unet_upconv_block.8} parent=50 // pred_check
          %p1291 = pneg %p103
        $region57: #{unet_upconv_block.8} parent=50 // pred_check_branch
          %1293 = sbr.rel (%p1291) target = $region59
        $region58: #{unet_upconv_block.8} parent=50 // pred_region
          %s1294 = smul.u32 4, %s17
        $region59: #{unet_upconv_block.8} parent=50 // pred_fallthru
          _
        // Predicated region
        $region60: #{unet_upconv_block.8} parent=50 // pred_check
          %p1295 = pneg %p129
        $region61: #{unet_upconv_block.8} parent=50 // pred_check_branch
          %1297 = sbr.rel (%p1295) target = $region63
        $region62: #{unet_upconv_block.8} parent=50 // pred_region
          _
        $region63: #{unet_upconv_block.8} parent=50 // pred_fallthru
          _
        // Predicated region
        $region64: #{unet_upconv_block.8} parent=50 // pred_check
          %p1298 = pneg %p155
        $region65: #{unet_upconv_block.8} parent=50 // pred_check_branch
          %1300 = sbr.rel (%p1298) target = $region67
        $region66: #{unet_upconv_block.8} parent=50 // pred_region
          _
        $region67: #{unet_upconv_block.8} parent=50 // pred_fallthru
          _
      $region51: #{unet_upconv_block.8} parent=5 // pred_fallthru
        _
      %p1301 = scmp.le.s32.totalorder 2, %s12
      // Predicated region
      $region68: #{unet_upconv_block.8} parent=5 // pred_check
        %p1302 = pneg %p1301
      $region69: #{unet_upconv_block.8} parent=5 // pred_check_branch
        %1304 = sbr.rel (%p1302) target = $region71
      $region70: #{unet_upconv_block.8} parent=5 // pred_region
        %s1305 = ssub.s32 %s12, 2
        // Predicated region
        $region72: #{unet_upconv_block.8} parent=70 // pred_check
          %p1306 = pneg %p109
        $region73: #{unet_upconv_block.8} parent=70 // pred_check_branch
          %1308 = sbr.rel (%p1306) target = $region75
        $region74: #{unet_upconv_block.8} parent=70 // pred_region
          %s1309 = smul.u32 4, %s18
          %p1310 = scmp.lt.s32.totalorder %s1309, 15
          %s1311 = scalar_select %p1310, %s1309, 15
          %s1312 = smul.addr %s1311, 8
          %s1313 = scalar_lea.vmem %s3, %s1312
        $region75: #{unet_upconv_block.8} parent=70 // pred_fallthru
          _
        // Predicated region
        $region76: #{unet_upconv_block.8} parent=70 // pred_check
          %p1314 = pneg %p135
        $region77: #{unet_upconv_block.8} parent=70 // pred_check_branch
          %1316 = sbr.rel (%p1314) target = $region79
        $region78: #{unet_upconv_block.8} parent=70 // pred_region
          %p1317 = scmp.lt.s32.totalorder %s18, 3
          %s1318 = scalar_select %p1317, %s18, 3
          %s1319 = smul.addr %s1318, 8
          %s1320 = scalar_lea.vmem %s4, %s1319
        $region79: #{unet_upconv_block.8} parent=70 // pred_fallthru
          _
        // Predicated region
        $region80: #{unet_upconv_block.8} parent=70 // pred_check
          %p1321 = pneg %p161
        $region81: #{unet_upconv_block.8} parent=70 // pred_check_branch
          %1323 = sbr.rel (%p1321) target = $region83
        $region82: #{unet_upconv_block.8} parent=70 // pred_region
          %p1324 = scmp.lt.s32.totalorder %s18, 3
          %s1325 = scalar_select %p1324, %s18, 3
          %s1326 = smul.addr %s1325, 8
          %s1327 = scalar_lea.vmem %s5, %s1326
        $region83: #{unet_upconv_block.8} parent=70 // pred_fallthru
          _
      $region71: #{unet_upconv_block.8} parent=5 // pred_fallthru
        _
    $region6: #{unet_upconv_block.8} parent=1 // loop_footer
      %s16 = sadd.s32 1, %s12
    $region7: #{unet_upconv_block.8} parent=1 // loop_footer_branch
      %11 = sbr.rel target = $region3
    $region8: #{unet_upconv_block.8} parent=1 // loop_exit
      _

</llo_original>
